<compile_context>
chip_gen: v7x
topology: tpu7x:2x2x1
jax: 0.10.0
libtpu: 0.0.40
codegen_flags: <defaults>
</compile_context>

<pallas_src>
import functools

import jax
import jax.numpy as jnp
from jax import lax
from jax.experimental import pallas as pl
from jax.experimental.pallas import tpu as pltpu


# ----------------------------------------------------------------------------
# KNRM buffer construction (same formulas as the PyTorch module)
# ----------------------------------------------------------------------------
def kernel_mus(n_kernels: int):
    l_mu = [1.0]
    if n_kernels == 1:
        return l_mu
    bin_size = 2.0 / (n_kernels - 1)
    l_mu.append(1 - bin_size / 2)
    for i in range(1, n_kernels - 1):
        l_mu.append(l_mu[i] - bin_size)
    return l_mu


def kernel_sigmas(n_kernels: int):
    bin_size = 2.0 / (n_kernels - 1)
    l_sigma = [0.0001]
    if n_kernels == 1:
        return l_sigma
    l_sigma += [0.5 * bin_size] * (n_kernels - 1)
    return l_sigma


# ----------------------------------------------------------------------------
# Pallas kernel: one tile of `block_b` batch elements per grid step
# ----------------------------------------------------------------------------
def knrm_kernel(mu_ref, coef_ref, w_ref, b_ref,
                qmask_ref, dmask_ref, qemb_ref, demb_ref,
                out_ref, *, n_kernels: int):
    qe = qemb_ref[...]            # (Bt, Q, E)  bf16
    de = demb_ref[...]            # (Bt, D, E)  bf16
    qm = qmask_ref[...]           # (Bt, Q)     f32  query pad/oov mask
    dm = dmask_ref[...]           # (Bt, D)     f32  document pad/oov mask

    # Batched interaction matrices: contract over E with batch dim B.
    # bf16 operands, f32 accumulation on the MXU.
    inter = lax.dot_general(
        qe, de,
        dimension_numbers=(((2,), (2,)), ((0,), (0,))),
        preferred_element_type=jnp.float32,
    )                              # (Bt, Q, D)

    # Fold the document pad mask in ONCE: push masked positions far away from
    # every mu so exp(coef * diff^2) underflows to exactly 0 -- identical to
    # multiplying the kernel-pooling tensor by the mask, but done a single
    # time instead of once per Gaussian kernel.
    inter = jnp.where(dm[:, None, :] > 0.0, inter, -1e4)

    # Accumulate sum_k w_k * log(sum_d kernel_k)  as a (Bt, Q) vector; the
    # query mask + Q-reduction + dense bias are applied once after the loop.
    acc = jnp.zeros(qm.shape, jnp.float32)              # (Bt, Q)
    for k in range(n_kernels):                          # K ~ 11, fully unrolled
        mu_k = mu_ref[k]                                # scalars from SMEM
        coef_k = coef_ref[k]                            # -0.5 / sigma_k^2
        diff = inter - mu_k
        kp = jnp.exp(coef_k * diff * diff)              # (Bt, Q, D)
        ks = jnp.sum(kp, axis=2)                        # (Bt, Q) masked doc-sum
        acc = acc + w_ref[k] * jnp.log(jnp.maximum(ks, 1e-10))

    scores = jnp.sum(acc * qm, axis=1) + b_ref[0]       # (Bt,)
    out_ref[0, 0, :] = scores


# ----------------------------------------------------------------------------
# Wrapper
# ----------------------------------------------------------------------------
def knrm_forward(query_tokens, doc_tokens, emb_table, mu, sigma,
                 dense_w, dense_b, *, block_b: int = 8):
    B, Q = query_tokens.shape
    _, D = doc_tokens.shape
    E = emb_table.shape[1]
    K = mu.shape[0]

    # Pad batch to a multiple of block_b with all-pad rows (discarded at the end).
    Bp = ((B + block_b - 1) // block_b) * block_b
    if Bp != B:
        query_tokens = jnp.pad(query_tokens, ((0, Bp - B), (0, 0)))
        doc_tokens = jnp.pad(doc_tokens, ((0, Bp - B), (0, 0)))

    # Glue: bf16 embedding lookup (halves HBM traffic for the dominant inputs)
    # + pad masks.  The Gaussian/log math stays in f32 inside the kernel.
    emb_bf16 = emb_table.astype(jnp.bfloat16)
    q_emb = jnp.take(emb_bf16, query_tokens, axis=0)          # (Bp, Q, E) bf16
    d_emb = jnp.take(emb_bf16, doc_tokens, axis=0)            # (Bp, D, E) bf16
    q_mask = (query_tokens > 0).astype(jnp.float32)           # (Bp, Q)
    d_mask = (doc_tokens > 0).astype(jnp.float32)             # (Bp, D)

    # Host-precomputed per-kernel coefficient: -0.5 / sigma_k^2
    coef = (-0.5 / (sigma * sigma)).astype(jnp.float32)

    nb = Bp // block_b
    smem_spec = pl.BlockSpec(memory_space=pltpu.MemorySpace.SMEM)

    out = pl.pallas_call(
        functools.partial(knrm_kernel, n_kernels=K),
        out_shape=jax.ShapeDtypeStruct((nb, 1, block_b), jnp.float32),
        grid=(nb,),
        in_specs=[
            smem_spec,                                            # mu      (K,)
            smem_spec,                                            # coef    (K,)
            smem_spec,                                            # dense_w (K,)
            smem_spec,                                            # dense_b (1,)
            pl.BlockSpec((block_b, Q), lambda b: (b, 0)),         # q_mask
            pl.BlockSpec((block_b, D), lambda b: (b, 0)),         # d_mask
            pl.BlockSpec((block_b, Q, E), lambda b: (b, 0, 0)),   # q_emb
            pl.BlockSpec((block_b, D, E), lambda b: (b, 0, 0)),   # d_emb
        ],
        out_specs=pl.BlockSpec((1, 1, block_b), lambda b: (b, 0, 0)),
        compiler_params=pltpu.CompilerParams(
            # batch tiles are fully independent -> shard across TCs on v7x
            dimension_semantics=("parallel",)),
    )(mu, coef, dense_w, dense_b, q_mask, d_mask, q_emb, d_emb)

    return out.reshape(Bp, 1)[:B]


# ----------------------------------------------------------------------------
# Pure-JAX reference: mirrors the PyTorch forward math exactly; embeddings are
# rounded to bf16 (same precision choice as the kernel's matmul operands) so
# the comparison isolates kernel correctness.
# ----------------------------------------------------------------------------
def knrm_reference(query_tokens, doc_tokens, emb_table, mu, sigma, dense_w, dense_b):
    K = mu.shape[0]
    q_mask = (query_tokens > 0).astype(jnp.float32)
    d_mask = (doc_tokens > 0).astype(jnp.float32)
    emb_bf16 = emb_table.astype(jnp.bfloat16)
    qe = jnp.take(emb_bf16, query_tokens, axis=0)
    de = jnp.take(emb_bf16, doc_tokens, axis=0)
    inter = jnp.einsum('bqe,bde->bqd', qe, de,
                       preferred_element_type=jnp.float32)            # bmm
    mu4 = mu.reshape(1, 1, 1, K)
    sig4 = sigma.reshape(1, 1, 1, K)
    kp = jnp.exp(-0.5 * (inter[..., None] - mu4) ** 2 / sig4 ** 2)
    ks = jnp.sum(kp * d_mask[:, None, :, None], axis=2)
    lp = jnp.log(jnp.clip(ks, 1e-10)) * q_mask[..., None]
    lps = jnp.sum(lp, axis=1)                                         # (B, K)
    return lps @ dense_w.reshape(K, 1) + dense_b                      # (B, 1)


if __name__ == "__main__":
    # Small, module-consistent shapes (two batch tiles -> exercises the grid)
    B, Q, D, E, K, VOCAB = 16, 8, 16, 32, 11, 64
    BLOCK_B = 8   # raise to 64-128 in production for lane-dense output tiles

    key = jax.random.PRNGKey(0)
    k_emb, k_qt, k_dt, k_w, k_b = jax.random.split(key, 5)

    # deterministic "word_embeddings": random table, scaled so dot products
    # land roughly in the kernel mu range
    emb_table = jax.random.normal(k_emb, (VOCAB, E), jnp.float32) * 0.1

    # token ids in [1, VOCAB), with trailing padding (id 0)
    query_tokens = jax.random.randint(k_qt, (B, Q), 1, VOCAB, dtype=jnp.int32)
    query_tokens = query_tokens.at[:, -2:].set(0)
    doc_tokens = jax.random.randint(k_dt, (B, D), 1, VOCAB, dtype=jnp.int32)
    doc_tokens = doc_tokens.at[:, -5:].set(0)

    # KNRM buffers
    mu = jnp.asarray(kernel_mus(K), jnp.float32)          # (K,)
    sigma = jnp.asarray(kernel_sigmas(K), jnp.float32)    # (K,)

    # dense = nn.Linear(n_kernels, 1): deterministic uniform init like torch
    bound = 1.0 / (K ** 0.5)
    dense_w = jax.random.uniform(k_w, (K,), jnp.float32, -bound, bound)
    dense_b = jax.random.uniform(k_b, (1,), jnp.float32, -bound, bound)

    out = knrm_forward(query_tokens, doc_tokens, emb_table,
                       mu, sigma, dense_w, dense_b, block_b=BLOCK_B)
    out = jax.block_until_ready(out)

    ref = knrm_reference(query_tokens, doc_tokens, emb_table,
                         mu, sigma, dense_w, dense_b)
    ref = jax.block_until_ready(ref)

    assert out.shape == (B, 1)
    assert jnp.allclose(out, ref, atol=1e-3, rtol=1e-3), (out, ref)
    print("KERNEL_OK")
</pallas_src>

<mosaic_0001>
module attributes {stable_mosaic.version = 11 : i64} {
  func.func @knrm_kernel(%arg0: i32, %arg1: memref<11xf32, #tpu.memory_space<smem>>, %arg2: memref<11xf32, #tpu.memory_space<smem>>, %arg3: memref<11xf32, #tpu.memory_space<smem>>, %arg4: memref<1xf32, #tpu.memory_space<smem>>, %arg5: memref<8x8xf32, #tpu.memory_space<vmem>>, %arg6: memref<8x16xf32, #tpu.memory_space<vmem>>, %arg7: memref<8x8x32xbf16, #tpu.memory_space<vmem>>, %arg8: memref<8x16x32xbf16, #tpu.memory_space<vmem>>, %arg9: memref<1x1x8xf32, #tpu.memory_space<vmem>>) attributes {dimension_semantics = [#tpu.dimension_semantics<parallel>], iteration_bounds = array<i64: 2>, scalar_prefetch = 0 : i64, scratch_operands = 0 : i64, tpu.core_type = #tpu.core_type<tc>, window_params = [{transform_indices = @transform_0, window_bounds = array<i64: 11>}, {transform_indices = @transform_1, window_bounds = array<i64: 11>}, {transform_indices = @transform_2, window_bounds = array<i64: 11>}, {transform_indices = @transform_3, window_bounds = array<i64: 1>}, {transform_indices = @transform_4, window_bounds = array<i64: 8, 8>}, {transform_indices = @transform_5, window_bounds = array<i64: 8, 16>}, {transform_indices = @transform_6, window_bounds = array<i64: 8, 8, 32>}, {transform_indices = @transform_7, window_bounds = array<i64: 8, 16, 32>}, {transform_indices = @transform_8, window_bounds = array<i64: 1, 1, 8>}]} {
    %c0 = arith.constant 0 : index
    %c0_0 = arith.constant 0 : index
    %c0_1 = arith.constant 0 : index
    %0 = vector.load %arg7[%c0, %c0_0, %c0_1] : memref<8x8x32xbf16, #tpu.memory_space<vmem>>, vector<8x8x32xbf16>
    %c0_2 = arith.constant 0 : index
    %c0_3 = arith.constant 0 : index
    %c0_4 = arith.constant 0 : index
    %1 = vector.load %arg8[%c0_2, %c0_3, %c0_4] : memref<8x16x32xbf16, #tpu.memory_space<vmem>>, vector<8x16x32xbf16>
    %c0_5 = arith.constant 0 : index
    %c0_6 = arith.constant 0 : index
    %2 = vector.load %arg5[%c0_5, %c0_6] : memref<8x8xf32, #tpu.memory_space<vmem>>, vector<8x8xf32>
    %c0_7 = arith.constant 0 : index
    %c0_8 = arith.constant 0 : index
    %3 = vector.load %arg6[%c0_7, %c0_8] : memref<8x16xf32, #tpu.memory_space<vmem>>, vector<8x16xf32>
    %cst = arith.constant dense<0.000000e+00> : vector<8x8x16xf32>
    %4 = tpu.matmul %0, %1, %cst {dimension_numbers = #tpu.dot_dimension_numbers<[2], [2], [1], [1], [0, 0, 0, 1, 1, 1], [0], [0]>} : vector<8x8x32xbf16>, vector<8x16x32xbf16>, vector<8x8x16xf32> -> vector<8x8x16xf32>
    %5 = vector.shape_cast %3 : vector<8x16xf32> to vector<8x1x16xf32>
    %cst_9 = arith.constant 0.000000e+00 : f32
    %6 = vector.broadcast %cst_9 : f32 to vector<8x1x16xf32>
    %7 = arith.cmpf ogt, %5, %6 : vector<8x1x16xf32>
    %cst_10 = arith.constant -1.000000e+04 : f32
    %8 = vector.shape_cast %7 : vector<8x1x16xi1> to vector<8x1x16xi1>
    %9 = vector.broadcast %8 : vector<8x1x16xi1> to vector<8x8x16xi1>
    %10 = vector.broadcast %cst_10 : f32 to vector<8x8x16xf32>
    %11 = arith.select %9, %4, %10 : vector<8x8x16xi1>, vector<8x8x16xf32>
    %cst_11 = arith.constant 0.000000e+00 : f32
    %12 = vector.broadcast %cst_11 : f32 to vector<8x8xf32>
    %c0_12 = arith.constant 0 : index
    %13 = memref.load %arg1[%c0_12] : memref<11xf32, #tpu.memory_space<smem>>
    %c0_13 = arith.constant 0 : index
    %14 = memref.load %arg2[%c0_13] : memref<11xf32, #tpu.memory_space<smem>>
    %15 = vector.broadcast %13 : f32 to vector<8x8x16xf32>
    %16 = arith.subf %11, %15 : vector<8x8x16xf32>
    %17 = vector.broadcast %14 : f32 to vector<8x8x16xf32>
    %18 = arith.mulf %17, %16 : vector<8x8x16xf32>
    %19 = arith.mulf %18, %16 : vector<8x8x16xf32>
    %20 = math.exp %19 : vector<8x8x16xf32>
    %cst_14 = arith.constant dense<0.000000e+00> : vector<8x8xf32>
    %21 = vector.multi_reduction <add>, %20, %cst_14 [2] : vector<8x8x16xf32> to vector<8x8xf32>
    %c0_15 = arith.constant 0 : index
    %22 = memref.load %arg3[%c0_15] : memref<11xf32, #tpu.memory_space<smem>>
    %cst_16 = arith.constant 1.000000e-10 : f32
    %23 = vector.broadcast %cst_16 : f32 to vector<8x8xf32>
    %24 = arith.maximumf %21, %23 : vector<8x8xf32>
    %25 = math.log %24 : vector<8x8xf32>
    %26 = vector.broadcast %22 : f32 to vector<8x8xf32>
    %27 = arith.mulf %26, %25 : vector<8x8xf32>
    %28 = arith.addf %12, %27 : vector<8x8xf32>
    %c1 = arith.constant 1 : index
    %29 = memref.load %arg1[%c1] : memref<11xf32, #tpu.memory_space<smem>>
    %c1_17 = arith.constant 1 : index
    %30 = memref.load %arg2[%c1_17] : memref<11xf32, #tpu.memory_space<smem>>
    %31 = vector.broadcast %29 : f32 to vector<8x8x16xf32>
    %32 = arith.subf %11, %31 : vector<8x8x16xf32>
    %33 = vector.broadcast %30 : f32 to vector<8x8x16xf32>
    %34 = arith.mulf %33, %32 : vector<8x8x16xf32>
    %35 = arith.mulf %34, %32 : vector<8x8x16xf32>
    %36 = math.exp %35 : vector<8x8x16xf32>
    %cst_18 = arith.constant dense<0.000000e+00> : vector<8x8xf32>
    %37 = vector.multi_reduction <add>, %36, %cst_18 [2] : vector<8x8x16xf32> to vector<8x8xf32>
    %c1_19 = arith.constant 1 : index
    %38 = memref.load %arg3[%c1_19] : memref<11xf32, #tpu.memory_space<smem>>
    %cst_20 = arith.constant 1.000000e-10 : f32
    %39 = vector.broadcast %cst_20 : f32 to vector<8x8xf32>
    %40 = arith.maximumf %37, %39 : vector<8x8xf32>
    %41 = math.log %40 : vector<8x8xf32>
    %42 = vector.broadcast %38 : f32 to vector<8x8xf32>
    %43 = arith.mulf %42, %41 : vector<8x8xf32>
    %44 = arith.addf %28, %43 : vector<8x8xf32>
    %c2 = arith.constant 2 : index
    %45 = memref.load %arg1[%c2] : memref<11xf32, #tpu.memory_space<smem>>
    %c2_21 = arith.constant 2 : index
    %46 = memref.load %arg2[%c2_21] : memref<11xf32, #tpu.memory_space<smem>>
    %47 = vector.broadcast %45 : f32 to vector<8x8x16xf32>
    %48 = arith.subf %11, %47 : vector<8x8x16xf32>
    %49 = vector.broadcast %46 : f32 to vector<8x8x16xf32>
    %50 = arith.mulf %49, %48 : vector<8x8x16xf32>
    %51 = arith.mulf %50, %48 : vector<8x8x16xf32>
    %52 = math.exp %51 : vector<8x8x16xf32>
    %cst_22 = arith.constant dense<0.000000e+00> : vector<8x8xf32>
    %53 = vector.multi_reduction <add>, %52, %cst_22 [2] : vector<8x8x16xf32> to vector<8x8xf32>
    %c2_23 = arith.constant 2 : index
    %54 = memref.load %arg3[%c2_23] : memref<11xf32, #tpu.memory_space<smem>>
    %cst_24 = arith.constant 1.000000e-10 : f32
    %55 = vector.broadcast %cst_24 : f32 to vector<8x8xf32>
    %56 = arith.maximumf %53, %55 : vector<8x8xf32>
    %57 = math.log %56 : vector<8x8xf32>
    %58 = vector.broadcast %54 : f32 to vector<8x8xf32>
    %59 = arith.mulf %58, %57 : vector<8x8xf32>
    %60 = arith.addf %44, %59 : vector<8x8xf32>
    %c3 = arith.constant 3 : index
    %61 = memref.load %arg1[%c3] : memref<11xf32, #tpu.memory_space<smem>>
    %c3_25 = arith.constant 3 : index
    %62 = memref.load %arg2[%c3_25] : memref<11xf32, #tpu.memory_space<smem>>
    %63 = vector.broadcast %61 : f32 to vector<8x8x16xf32>
    %64 = arith.subf %11, %63 : vector<8x8x16xf32>
    %65 = vector.broadcast %62 : f32 to vector<8x8x16xf32>
    %66 = arith.mulf %65, %64 : vector<8x8x16xf32>
    %67 = arith.mulf %66, %64 : vector<8x8x16xf32>
    %68 = math.exp %67 : vector<8x8x16xf32>
    %cst_26 = arith.constant dense<0.000000e+00> : vector<8x8xf32>
    %69 = vector.multi_reduction <add>, %68, %cst_26 [2] : vector<8x8x16xf32> to vector<8x8xf32>
    %c3_27 = arith.constant 3 : index
    %70 = memref.load %arg3[%c3_27] : memref<11xf32, #tpu.memory_space<smem>>
    %cst_28 = arith.constant 1.000000e-10 : f32
    %71 = vector.broadcast %cst_28 : f32 to vector<8x8xf32>
    %72 = arith.maximumf %69, %71 : vector<8x8xf32>
    %73 = math.log %72 : vector<8x8xf32>
    %74 = vector.broadcast %70 : f32 to vector<8x8xf32>
    %75 = arith.mulf %74, %73 : vector<8x8xf32>
    %76 = arith.addf %60, %75 : vector<8x8xf32>
    %c4 = arith.constant 4 : index
    %77 = memref.load %arg1[%c4] : memref<11xf32, #tpu.memory_space<smem>>
    %c4_29 = arith.constant 4 : index
    %78 = memref.load %arg2[%c4_29] : memref<11xf32, #tpu.memory_space<smem>>
    %79 = vector.broadcast %77 : f32 to vector<8x8x16xf32>
    %80 = arith.subf %11, %79 : vector<8x8x16xf32>
    %81 = vector.broadcast %78 : f32 to vector<8x8x16xf32>
    %82 = arith.mulf %81, %80 : vector<8x8x16xf32>
    %83 = arith.mulf %82, %80 : vector<8x8x16xf32>
    %84 = math.exp %83 : vector<8x8x16xf32>
    %cst_30 = arith.constant dense<0.000000e+00> : vector<8x8xf32>
    %85 = vector.multi_reduction <add>, %84, %cst_30 [2] : vector<8x8x16xf32> to vector<8x8xf32>
    %c4_31 = arith.constant 4 : index
    %86 = memref.load %arg3[%c4_31] : memref<11xf32, #tpu.memory_space<smem>>
    %cst_32 = arith.constant 1.000000e-10 : f32
    %87 = vector.broadcast %cst_32 : f32 to vector<8x8xf32>
    %88 = arith.maximumf %85, %87 : vector<8x8xf32>
    %89 = math.log %88 : vector<8x8xf32>
    %90 = vector.broadcast %86 : f32 to vector<8x8xf32>
    %91 = arith.mulf %90, %89 : vector<8x8xf32>
    %92 = arith.addf %76, %91 : vector<8x8xf32>
    %c5 = arith.constant 5 : index
    %93 = memref.load %arg1[%c5] : memref<11xf32, #tpu.memory_space<smem>>
    %c5_33 = arith.constant 5 : index
    %94 = memref.load %arg2[%c5_33] : memref<11xf32, #tpu.memory_space<smem>>
    %95 = vector.broadcast %93 : f32 to vector<8x8x16xf32>
    %96 = arith.subf %11, %95 : vector<8x8x16xf32>
    %97 = vector.broadcast %94 : f32 to vector<8x8x16xf32>
    %98 = arith.mulf %97, %96 : vector<8x8x16xf32>
    %99 = arith.mulf %98, %96 : vector<8x8x16xf32>
    %100 = math.exp %99 : vector<8x8x16xf32>
    %cst_34 = arith.constant dense<0.000000e+00> : vector<8x8xf32>
    %101 = vector.multi_reduction <add>, %100, %cst_34 [2] : vector<8x8x16xf32> to vector<8x8xf32>
    %c5_35 = arith.constant 5 : index
    %102 = memref.load %arg3[%c5_35] : memref<11xf32, #tpu.memory_space<smem>>
    %cst_36 = arith.constant 1.000000e-10 : f32
    %103 = vector.broadcast %cst_36 : f32 to vector<8x8xf32>
    %104 = arith.maximumf %101, %103 : vector<8x8xf32>
    %105 = math.log %104 : vector<8x8xf32>
    %106 = vector.broadcast %102 : f32 to vector<8x8xf32>
    %107 = arith.mulf %106, %105 : vector<8x8xf32>
    %108 = arith.addf %92, %107 : vector<8x8xf32>
    %c6 = arith.constant 6 : index
    %109 = memref.load %arg1[%c6] : memref<11xf32, #tpu.memory_space<smem>>
    %c6_37 = arith.constant 6 : index
    %110 = memref.load %arg2[%c6_37] : memref<11xf32, #tpu.memory_space<smem>>
    %111 = vector.broadcast %109 : f32 to vector<8x8x16xf32>
    %112 = arith.subf %11, %111 : vector<8x8x16xf32>
    %113 = vector.broadcast %110 : f32 to vector<8x8x16xf32>
    %114 = arith.mulf %113, %112 : vector<8x8x16xf32>
    %115 = arith.mulf %114, %112 : vector<8x8x16xf32>
    %116 = math.exp %115 : vector<8x8x16xf32>
    %cst_38 = arith.constant dense<0.000000e+00> : vector<8x8xf32>
    %117 = vector.multi_reduction <add>, %116, %cst_38 [2] : vector<8x8x16xf32> to vector<8x8xf32>
    %c6_39 = arith.constant 6 : index
    %118 = memref.load %arg3[%c6_39] : memref<11xf32, #tpu.memory_space<smem>>
    %cst_40 = arith.constant 1.000000e-10 : f32
    %119 = vector.broadcast %cst_40 : f32 to vector<8x8xf32>
    %120 = arith.maximumf %117, %119 : vector<8x8xf32>
    %121 = math.log %120 : vector<8x8xf32>
    %122 = vector.broadcast %118 : f32 to vector<8x8xf32>
    %123 = arith.mulf %122, %121 : vector<8x8xf32>
    %124 = arith.addf %108, %123 : vector<8x8xf32>
    %c7 = arith.constant 7 : index
    %125 = memref.load %arg1[%c7] : memref<11xf32, #tpu.memory_space<smem>>
    %c7_41 = arith.constant 7 : index
    %126 = memref.load %arg2[%c7_41] : memref<11xf32, #tpu.memory_space<smem>>
    %127 = vector.broadcast %125 : f32 to vector<8x8x16xf32>
    %128 = arith.subf %11, %127 : vector<8x8x16xf32>
    %129 = vector.broadcast %126 : f32 to vector<8x8x16xf32>
    %130 = arith.mulf %129, %128 : vector<8x8x16xf32>
    %131 = arith.mulf %130, %128 : vector<8x8x16xf32>
    %132 = math.exp %131 : vector<8x8x16xf32>
    %cst_42 = arith.constant dense<0.000000e+00> : vector<8x8xf32>
    %133 = vector.multi_reduction <add>, %132, %cst_42 [2] : vector<8x8x16xf32> to vector<8x8xf32>
    %c7_43 = arith.constant 7 : index
    %134 = memref.load %arg3[%c7_43] : memref<11xf32, #tpu.memory_space<smem>>
    %cst_44 = arith.constant 1.000000e-10 : f32
    %135 = vector.broadcast %cst_44 : f32 to vector<8x8xf32>
    %136 = arith.maximumf %133, %135 : vector<8x8xf32>
    %137 = math.log %136 : vector<8x8xf32>
    %138 = vector.broadcast %134 : f32 to vector<8x8xf32>
    %139 = arith.mulf %138, %137 : vector<8x8xf32>
    %140 = arith.addf %124, %139 : vector<8x8xf32>
    %c8 = arith.constant 8 : index
    %141 = memref.load %arg1[%c8] : memref<11xf32, #tpu.memory_space<smem>>
    %c8_45 = arith.constant 8 : index
    %142 = memref.load %arg2[%c8_45] : memref<11xf32, #tpu.memory_space<smem>>
    %143 = vector.broadcast %141 : f32 to vector<8x8x16xf32>
    %144 = arith.subf %11, %143 : vector<8x8x16xf32>
    %145 = vector.broadcast %142 : f32 to vector<8x8x16xf32>
    %146 = arith.mulf %145, %144 : vector<8x8x16xf32>
    %147 = arith.mulf %146, %144 : vector<8x8x16xf32>
    %148 = math.exp %147 : vector<8x8x16xf32>
    %cst_46 = arith.constant dense<0.000000e+00> : vector<8x8xf32>
    %149 = vector.multi_reduction <add>, %148, %cst_46 [2] : vector<8x8x16xf32> to vector<8x8xf32>
    %c8_47 = arith.constant 8 : index
    %150 = memref.load %arg3[%c8_47] : memref<11xf32, #tpu.memory_space<smem>>
    %cst_48 = arith.constant 1.000000e-10 : f32
    %151 = vector.broadcast %cst_48 : f32 to vector<8x8xf32>
    %152 = arith.maximumf %149, %151 : vector<8x8xf32>
    %153 = math.log %152 : vector<8x8xf32>
    %154 = vector.broadcast %150 : f32 to vector<8x8xf32>
    %155 = arith.mulf %154, %153 : vector<8x8xf32>
    %156 = arith.addf %140, %155 : vector<8x8xf32>
    %c9 = arith.constant 9 : index
    %157 = memref.load %arg1[%c9] : memref<11xf32, #tpu.memory_space<smem>>
    %c9_49 = arith.constant 9 : index
    %158 = memref.load %arg2[%c9_49] : memref<11xf32, #tpu.memory_space<smem>>
    %159 = vector.broadcast %157 : f32 to vector<8x8x16xf32>
    %160 = arith.subf %11, %159 : vector<8x8x16xf32>
    %161 = vector.broadcast %158 : f32 to vector<8x8x16xf32>
    %162 = arith.mulf %161, %160 : vector<8x8x16xf32>
    %163 = arith.mulf %162, %160 : vector<8x8x16xf32>
    %164 = math.exp %163 : vector<8x8x16xf32>
    %cst_50 = arith.constant dense<0.000000e+00> : vector<8x8xf32>
    %165 = vector.multi_reduction <add>, %164, %cst_50 [2] : vector<8x8x16xf32> to vector<8x8xf32>
    %c9_51 = arith.constant 9 : index
    %166 = memref.load %arg3[%c9_51] : memref<11xf32, #tpu.memory_space<smem>>
    %cst_52 = arith.constant 1.000000e-10 : f32
    %167 = vector.broadcast %cst_52 : f32 to vector<8x8xf32>
    %168 = arith.maximumf %165, %167 : vector<8x8xf32>
    %169 = math.log %168 : vector<8x8xf32>
    %170 = vector.broadcast %166 : f32 to vector<8x8xf32>
    %171 = arith.mulf %170, %169 : vector<8x8xf32>
    %172 = arith.addf %156, %171 : vector<8x8xf32>
    %c10 = arith.constant 10 : index
    %173 = memref.load %arg1[%c10] : memref<11xf32, #tpu.memory_space<smem>>
    %c10_53 = arith.constant 10 : index
    %174 = memref.load %arg2[%c10_53] : memref<11xf32, #tpu.memory_space<smem>>
    %175 = vector.broadcast %173 : f32 to vector<8x8x16xf32>
    %176 = arith.subf %11, %175 : vector<8x8x16xf32>
    %177 = vector.broadcast %174 : f32 to vector<8x8x16xf32>
    %178 = arith.mulf %177, %176 : vector<8x8x16xf32>
    %179 = arith.mulf %178, %176 : vector<8x8x16xf32>
    %180 = math.exp %179 : vector<8x8x16xf32>
    %cst_54 = arith.constant dense<0.000000e+00> : vector<8x8xf32>
    %181 = vector.multi_reduction <add>, %180, %cst_54 [2] : vector<8x8x16xf32> to vector<8x8xf32>
    %c10_55 = arith.constant 10 : index
    %182 = memref.load %arg3[%c10_55] : memref<11xf32, #tpu.memory_space<smem>>
    %cst_56 = arith.constant 1.000000e-10 : f32
    %183 = vector.broadcast %cst_56 : f32 to vector<8x8xf32>
    %184 = arith.maximumf %181, %183 : vector<8x8xf32>
    %185 = math.log %184 : vector<8x8xf32>
    %186 = vector.broadcast %182 : f32 to vector<8x8xf32>
    %187 = arith.mulf %186, %185 : vector<8x8xf32>
    %188 = arith.addf %172, %187 : vector<8x8xf32>
    %189 = arith.mulf %188, %2 : vector<8x8xf32>
    %cst_57 = arith.constant dense<0.000000e+00> : vector<8xf32>
    %190 = vector.multi_reduction <add>, %189, %cst_57 [1] : vector<8x8xf32> to vector<8xf32>
    %c0_58 = arith.constant 0 : index
    %191 = memref.load %arg4[%c0_58] : memref<1xf32, #tpu.memory_space<smem>>
    %192 = vector.broadcast %191 : f32 to vector<8xf32>
    %193 = arith.addf %190, %192 : vector<8xf32>
    %c0_59 = arith.constant 0 : index
    %c0_60 = arith.constant 0 : index
    %c0_61 = arith.constant 0 : index
    %194 = vector.load %arg9[%c0_59, %c0_60, %c0_61] : memref<1x1x8xf32, #tpu.memory_space<vmem>>, vector<1x1x8xf32>
    %195 = vector.shape_cast %194 : vector<1x1x8xf32> to vector<8xf32>
    %196 = vector.shape_cast %193 : vector<8xf32> to vector<1x1x8xf32>
    tpu.vector_store %arg9[%c0_59, %c0_60, %c0_61], %196 {strides = array<i32>} : memref<1x1x8xf32, #tpu.memory_space<vmem>>, vector<1x1x8xf32>,
    return
  }
  func.func @transform_0(%arg0: i32) -> i32 {
    %c0_i32 = arith.constant 0 : i32
    %c0_i32_0 = arith.constant 0 : i32
    return %c0_i32 : i32
  }
  func.func @transform_1(%arg0: i32) -> i32 {
    %c0_i32 = arith.constant 0 : i32
    %c0_i32_0 = arith.constant 0 : i32
    return %c0_i32 : i32
  }
  func.func @transform_2(%arg0: i32) -> i32 {
    %c0_i32 = arith.constant 0 : i32
    %c0_i32_0 = arith.constant 0 : i32
    return %c0_i32 : i32
  }
  func.func @transform_3(%arg0: i32) -> i32 {
    %c0_i32 = arith.constant 0 : i32
    %c0_i32_0 = arith.constant 0 : i32
    return %c0_i32 : i32
  }
  func.func @transform_4(%arg0: i32) -> (i32, i32) {
    %c0_i32 = arith.constant 0 : i32
    %c0_i32_0 = arith.constant 0 : i32
    return %arg0, %c0_i32 : i32, i32
  }
  func.func @transform_5(%arg0: i32) -> (i32, i32) {
    %c0_i32 = arith.constant 0 : i32
    %c0_i32_0 = arith.constant 0 : i32
    return %arg0, %c0_i32 : i32, i32
  }
  func.func @transform_6(%arg0: i32) -> (i32, i32, i32) {
    %c0_i32 = arith.constant 0 : i32
    %c0_i32_0 = arith.constant 0 : i32
    %c0_i32_1 = arith.constant 0 : i32
    return %arg0, %c0_i32, %c0_i32_0 : i32, i32, i32
  }
  func.func @transform_7(%arg0: i32) -> (i32, i32, i32) {
    %c0_i32 = arith.constant 0 : i32
    %c0_i32_0 = arith.constant 0 : i32
    %c0_i32_1 = arith.constant 0 : i32
    return %arg0, %c0_i32, %c0_i32_0 : i32, i32, i32
  }
  func.func @transform_8(%arg0: i32) -> (i32, i32, i32) {
    %c0_i32 = arith.constant 0 : i32
    %c0_i32_0 = arith.constant 0 : i32
    %c0_i32_1 = arith.constant 0 : i32
    return %arg0, %c0_i32, %c0_i32_0 : i32, i32, i32
  }
}

</mosaic_0001>

<llo_original>
// kernel: tpu_custom_call.1
$region0: #{tpu_custom_call.1}
  #allocation0 [shape = 'u32[]', space=smem, size = 0x4, offset = 0x4, fixed_abs, tag = 'smem constant byte address 0x4 - core index']
  #allocation1 [shape = 'u32[144,128]{1,0:T(1,128)}', space=vmem, size = 0x12000, scoped, tag = 'internal scratch']
  #allocation2 [shape = 'f32[1]{0:T(128)S(6)}', space=smem, size = 0x200, scoped, tag = 'scoped memory for tpu_custom_call.1']
  %s0 = inlined_call_operand.vmem [shape: f32[11], index: 0, kind: input, shape index: {}]
  %s1 = inlined_call_operand.vmem [shape: f32[11], index: 1, kind: input, shape index: {}]
  %s2 = inlined_call_operand.vmem [shape: f32[11], index: 2, kind: input, shape index: {}]
  %s3 = inlined_call_operand.<no memory space> [shape: f32[1], index: 3, kind: input, shape index: {}]
  %s4 = inlined_call_operand.vmem [shape: f32[16,8], index: 4, kind: input, shape index: {}]
  %s5 = inlined_call_operand.vmem [shape: f32[16,16], index: 5, kind: input, shape index: {}]
  %s6 = inlined_call_operand.hbm [shape: bf16[16,8,32], index: 6, kind: input, shape index: {}]
  %s7 = inlined_call_operand.hbm [shape: bf16[16,16,32], index: 7, kind: input, shape index: {}]
  %s8 = inlined_call_operand.hbm [shape: f32[2,1,8], index: 8, kind: output, shape index: {}]
  %s9 = sld [smem:[#allocation0]]
  $region85: #{tpu_custom_call.1} parent=0
    _
  %s11 = ssub.s32 1, %s9
  %s12 = scalar_select 0, %s11, %s9
  %13 = sst [smem:[#allocation2]] %s3
  $region1: #{tpu_custom_call.1} parent=0
    #allocation3 [shape = 'u8[512]{0}', space=smem, size = 0x200, scoped, tag = 'input window, operand 0, single buffered']
    #allocation4 [shape = 's32[2]{0}', space=sflag, size = 0x8, scoped, tag = 'scoped memory for tpu_custom_call.1']
    #allocation5 [shape = 's32[2]{0}', space=sflag, size = 0x8, scoped, tag = 'scoped memory for tpu_custom_call.1']
    #allocation6 [shape = 's32[2]{0}', space=sflag, size = 0x8, scoped, tag = 'scoped memory for tpu_custom_call.1']
    #allocation7 [shape = 'u8[512]{0}', space=smem, size = 0x200, scoped, tag = 'input window, operand 1, single buffered']
    #allocation8 [shape = 's32[1]{0}', space=sflag, size = 0x4, scoped, tag = 'scoped memory for tpu_custom_call.1']
    #allocation9 [shape = 'u8[512]{0}', space=smem, size = 0x200, scoped, tag = 'input window, operand 2, single buffered']
    #allocation10 [shape = 'u8[32768]{0}', space=vmem, size = 0x8000, scoped, tag = 'input window, operand 6']
    #allocation11 [shape = 'u8[65536]{0}', space=vmem, size = 0x10000, scoped, tag = 'input window, operand 7']
    #allocation12 [shape = 's32[2]{0}', space=sflag, size = 0x8, scoped, tag = 'scoped memory for tpu_custom_call.1']
    #allocation13 [shape = 'u8[1024]{0}', space=vmem, size = 0x400, scoped, tag = 'output window, operand 0']
    %14 = vsyncpa [#allocation6], 0
    %15 = vsyncpa [#allocation8], 0
    %16 = vsyncpa [#allocation4], 0
    %s17 = scalar_lea.sflag [#allocation4], 1
    %18 = vsyncpa %s17, 0
    %19 = vsyncpa [#allocation12], 0
    %s20 = scalar_lea.sflag [#allocation12], 1
    %21 = vsyncpa %s20, 0
    %22 = vsyncpa [#allocation5], 0
    %s23 = scalar_lea.sflag [#allocation5], 1
    %24 = vsyncpa %s23, 0
    loop: start=0, step=1, limit=4
    $region2: #{tpu_custom_call.1} parent=1 // loop_pre_header
      _
    $region3: #{tpu_custom_call.1} parent=1 // loop_header
      %s26 = sphi 0, %s30
      %p27 = scmp.ge.s32.totalorder %s26, 4
      %s34 = sphi 0, %s34
      %s36 = sphi 0, %s34
      %s37 = sphi 0, %s36
      %s51 = sphi 0, %s37
      %s55 = sphi 0, %s55
      %s57 = sphi 0, %s55
      %s58 = sphi 0, %s57
      %s72 = sphi 0, %s58
      %s76 = sphi 0, %s76
      %s78 = sphi 0, %s76
      %s79 = sphi 0, %s78
      %s93 = sphi 0, %s79
      %s97 = sphi 0, %s97
      %s99 = sphi 0, %s97
      %s100 = sphi 0, %s99
      %s114 = sphi 0, %s100
      %s120 = sphi 0, %s122
      %s123 = sphi 0, %s120
      %s124 = sphi 0, %s123
      %s140 = sphi 0, %s124
      %s146 = sphi 0, %s148
      %s149 = sphi 0, %s146
      %s150 = sphi 0, %s149
      %s166 = sphi 0, %s150
      %s172 = sphi 0, %s174
      %s175 = sphi 0, %s172
      %s176 = sphi 0, %s175
      %s192 = sphi 0, %s176
      %s198 = sphi 0, %s200
      %s201 = sphi 0, %s198
      %s202 = sphi 0, %s201
      %s218 = sphi 0, %s202
      %s224 = sphi 0, %s226
      %s227 = sphi 0, %s224
      %s228 = sphi 0, %s227
      %s244 = sphi 0, %s228
    $region4: #{tpu_custom_call.1} parent=1 // loop_header_branch
      %29 = sbr.rel (%p27) target = $region8
    $region5: #{tpu_custom_call.1} parent=1 // loop_body
      %s31 = ssub.s32 %s26, 1
      %s32 = ssub.s32 %s26, 2
      %s33 = sadd.s32 %s26, 1
      %s35 = sadd.s32 %s34, 1
      %p38 = scmp.eq.s32.totalorder %s26, 1
      %p39 = scmp.ne.s32.totalorder %s34, %s36
      %p40 = scmp.eq.s32.totalorder %s26, 0
      %p41 = por %p39, %p40
      %p42 = scmp.ne.s32.totalorder %s34, %s36
      %p43 = scmp.eq.s32.totalorder %s31, 1
      %p44 = por %p42, %p43
      %p45 = scmp.ne.s32.totalorder %s36, %s37
      %p46 = scmp.eq.s32.totalorder %s31, 0
      %p47 = por %p45, %p46
      %p48 = scmp.ne.s32.totalorder %s36, %s37
      %p49 = scmp.eq.s32.totalorder %s32, 1
      %p50 = por %p48, %p49
      %p52 = scmp.ne.s32.totalorder %s37, %s51
      %p53 = scmp.eq.s32.totalorder %s32, 0
      %p54 = por %p52, %p53
      %s56 = sadd.s32 %s55, 1
      %p59 = scmp.eq.s32.totalorder %s26, 1
      %p60 = scmp.ne.s32.totalorder %s55, %s57
      %p61 = scmp.eq.s32.totalorder %s26, 0
      %p62 = por %p60, %p61
      %p63 = scmp.ne.s32.totalorder %s55, %s57
      %p64 = scmp.eq.s32.totalorder %s31, 1
      %p65 = por %p63, %p64
      %p66 = scmp.ne.s32.totalorder %s57, %s58
      %p67 = scmp.eq.s32.totalorder %s31, 0
      %p68 = por %p66, %p67
      %p69 = scmp.ne.s32.totalorder %s57, %s58
      %p70 = scmp.eq.s32.totalorder %s32, 1
      %p71 = por %p69, %p70
      %p73 = scmp.ne.s32.totalorder %s58, %s72
      %p74 = scmp.eq.s32.totalorder %s32, 0
      %p75 = por %p73, %p74
      %s77 = sadd.s32 %s76, 1
      %p80 = scmp.eq.s32.totalorder %s26, 1
      %p81 = scmp.ne.s32.totalorder %s76, %s78
      %p82 = scmp.eq.s32.totalorder %s26, 0
      %p83 = por %p81, %p82
      %p84 = scmp.ne.s32.totalorder %s76, %s78
      %p85 = scmp.eq.s32.totalorder %s31, 1
      %p86 = por %p84, %p85
      %p87 = scmp.ne.s32.totalorder %s78, %s79
      %p88 = scmp.eq.s32.totalorder %s31, 0
      %p89 = por %p87, %p88
      %p90 = scmp.ne.s32.totalorder %s78, %s79
      %p91 = scmp.eq.s32.totalorder %s32, 1
      %p92 = por %p90, %p91
      %p94 = scmp.ne.s32.totalorder %s79, %s93
      %p95 = scmp.eq.s32.totalorder %s32, 0
      %p96 = por %p94, %p95
      %s98 = sadd.s32 %s97, 1
      %p101 = scmp.eq.s32.totalorder %s26, 1
      %p102 = scmp.ne.s32.totalorder %s97, %s99
      %p103 = scmp.eq.s32.totalorder %s26, 0
      %p104 = por %p102, %p103
      %p105 = scmp.ne.s32.totalorder %s97, %s99
      %p106 = scmp.eq.s32.totalorder %s31, 1
      %p107 = por %p105, %p106
      %p108 = scmp.ne.s32.totalorder %s99, %s100
      %p109 = scmp.eq.s32.totalorder %s31, 0
      %p110 = por %p108, %p109
      %p111 = scmp.ne.s32.totalorder %s99, %s100
      %p112 = scmp.eq.s32.totalorder %s32, 1
      %p113 = por %p111, %p112
      %p115 = scmp.ne.s32.totalorder %s100, %s114
      %p116 = scmp.eq.s32.totalorder %s32, 0
      %p117 = por %p115, %p116
      %s118 = ssub.s32 %s26, %s33
      %p119 = scmp.eq.s32.totalorder %s118, 0
      %s121 = sadd.s32 %s120, 1
      %s122 = scalar_select %p119, %s120, %s121
      %p125 = pneg %p119
      %p126 = scmp.eq.s32.totalorder %s26, 1
      %p127 = por %p125, %p126
      %p128 = scmp.ne.s32.totalorder %s120, %s123
      %p129 = scmp.eq.s32.totalorder %s26, 0
      %p130 = por %p128, %p129
      %p131 = scmp.ne.s32.totalorder %s120, %s123
      %p132 = scmp.eq.s32.totalorder %s31, 1
      %p133 = por %p131, %p132
      %p134 = scmp.ne.s32.totalorder %s123, %s124
      %p135 = scmp.eq.s32.totalorder %s31, 0
      %p136 = por %p134, %p135
      %p137 = scmp.ne.s32.totalorder %s123, %s124
      %p138 = scmp.eq.s32.totalorder %s32, 1
      %p139 = por %p137, %p138
      %p141 = scmp.ne.s32.totalorder %s124, %s140
      %p142 = scmp.eq.s32.totalorder %s32, 0
      %p143 = por %p141, %p142
      %s144 = ssub.s32 %s26, %s33
      %p145 = scmp.eq.s32.totalorder %s144, 0
      %s147 = sadd.s32 %s146, 1
      %s148 = scalar_select %p145, %s146, %s147
      %p151 = pneg %p145
      %p152 = scmp.eq.s32.totalorder %s26, 1
      %p153 = por %p151, %p152
      %p154 = scmp.ne.s32.totalorder %s146, %s149
      %p155 = scmp.eq.s32.totalorder %s26, 0
      %p156 = por %p154, %p155
      %p157 = scmp.ne.s32.totalorder %s146, %s149
      %p158 = scmp.eq.s32.totalorder %s31, 1
      %p159 = por %p157, %p158
      %p160 = scmp.ne.s32.totalorder %s149, %s150
      %p161 = scmp.eq.s32.totalorder %s31, 0
      %p162 = por %p160, %p161
      %p163 = scmp.ne.s32.totalorder %s149, %s150
      %p164 = scmp.eq.s32.totalorder %s32, 1
      %p165 = por %p163, %p164
      %p167 = scmp.ne.s32.totalorder %s150, %s166
      %p168 = scmp.eq.s32.totalorder %s32, 0
      %p169 = por %p167, %p168
      %s170 = ssub.s32 %s26, %s33
      %p171 = scmp.eq.s32.totalorder %s170, 0
      %s173 = sadd.s32 %s172, 1
      %s174 = scalar_select %p171, %s172, %s173
      %p177 = pneg %p171
      %p178 = scmp.eq.s32.totalorder %s26, 1
      %p179 = por %p177, %p178
      %p180 = scmp.ne.s32.totalorder %s172, %s175
      %p181 = scmp.eq.s32.totalorder %s26, 0
      %p182 = por %p180, %p181
      %p183 = scmp.ne.s32.totalorder %s172, %s175
      %p184 = scmp.eq.s32.totalorder %s31, 1
      %p185 = por %p183, %p184
      %p186 = scmp.ne.s32.totalorder %s175, %s176
      %p187 = scmp.eq.s32.totalorder %s31, 0
      %p188 = por %p186, %p187
      %p189 = scmp.ne.s32.totalorder %s175, %s176
      %p190 = scmp.eq.s32.totalorder %s32, 1
      %p191 = por %p189, %p190
      %p193 = scmp.ne.s32.totalorder %s176, %s192
      %p194 = scmp.eq.s32.totalorder %s32, 0
      %p195 = por %p193, %p194
      %s196 = ssub.s32 %s26, %s33
      %p197 = scmp.eq.s32.totalorder %s196, 0
      %s199 = sadd.s32 %s198, 1
      %s200 = scalar_select %p197, %s198, %s199
      %p203 = pneg %p197
      %p204 = scmp.eq.s32.totalorder %s26, 1
      %p205 = por %p203, %p204
      %p206 = scmp.ne.s32.totalorder %s198, %s201
      %p207 = scmp.eq.s32.totalorder %s26, 0
      %p208 = por %p206, %p207
      %p209 = scmp.ne.s32.totalorder %s198, %s201
      %p210 = scmp.eq.s32.totalorder %s31, 1
      %p211 = por %p209, %p210
      %p212 = scmp.ne.s32.totalorder %s201, %s202
      %p213 = scmp.eq.s32.totalorder %s31, 0
      %p214 = por %p212, %p213
      %p215 = scmp.ne.s32.totalorder %s201, %s202
      %p216 = scmp.eq.s32.totalorder %s32, 1
      %p217 = por %p215, %p216
      %p219 = scmp.ne.s32.totalorder %s202, %s218
      %p220 = scmp.eq.s32.totalorder %s32, 0
      %p221 = por %p219, %p220
      %s222 = ssub.s32 %s26, %s33
      %p223 = scmp.eq.s32.totalorder %s222, 0
      %s225 = sadd.s32 %s224, 1
      %s226 = scalar_select %p223, %s224, %s225
      %p229 = pneg %p223
      %p230 = scmp.eq.s32.totalorder %s26, 1
      %p231 = por %p229, %p230
      %p232 = scmp.ne.s32.totalorder %s224, %s227
      %p233 = scmp.eq.s32.totalorder %s26, 0
      %p234 = por %p232, %p233
      %p235 = scmp.ne.s32.totalorder %s224, %s227
      %p236 = scmp.eq.s32.totalorder %s31, 1
      %p237 = por %p235, %p236
      %p238 = scmp.ne.s32.totalorder %s227, %s228
      %p239 = scmp.eq.s32.totalorder %s31, 0
      %p240 = por %p238, %p239
      %p241 = scmp.ne.s32.totalorder %s227, %s228
      %p242 = scmp.eq.s32.totalorder %s32, 1
      %p243 = por %p241, %p242
      %p245 = scmp.ne.s32.totalorder %s228, %s244
      %p246 = scmp.eq.s32.totalorder %s32, 0
      %p247 = por %p245, %p246
      %p248 = scmp.le.s32.totalorder 1, %s26
      %p249 = scmp.lt.s32.totalorder %s26, 3
      %p250 = pnand %p248, %p249
      %p251 = pneg %p250
      // Predicated region
      $region9: #{tpu_custom_call.1} parent=5 // pred_check
        _
      $region10: #{tpu_custom_call.1} parent=5 // pred_check_branch
        %253 = sbr.rel (%p250) target = $region12
      $region11: #{tpu_custom_call.1} parent=5 // pred_region
        %s254 = ssub.s32 %s26, 1
        // Predicated region
        $region13: #{tpu_custom_call.1} parent=11 // pred_check
          %p255 = pneg %p47
        $region14: #{tpu_custom_call.1} parent=11 // pred_check_branch
          %257 = sbr.rel (%p255) target = $region16
        $region15: #{tpu_custom_call.1} parent=11 // pred_region
          %s259 = ssub.s32 16, 16
          %260 = vsyncadd [#allocation6], %s259
          %s262 = sshll.u32 %s0, 4
          %s263 = int_to_ptr.vmem [resolvable:$true] %s262
          %265 = dma.vmem_to_smem %s263, 16, [#allocation3], [#allocation6]
        $region16: #{tpu_custom_call.1} parent=11 // pred_fallthru
          _
        // Predicated region
        $region17: #{tpu_custom_call.1} parent=11 // pred_check
          %p266 = pneg %p68
        $region18: #{tpu_custom_call.1} parent=11 // pred_check_branch
          %268 = sbr.rel (%p266) target = $region20
        $region19: #{tpu_custom_call.1} parent=11 // pred_region
          %s270 = ssub.s32 16, 16
          %271 = vsyncadd [#allocation8], %s270
          %s273 = sshll.u32 %s1, 4
          %s274 = int_to_ptr.vmem [resolvable:$true] %s273
          %276 = dma.vmem_to_smem %s274, 16, [#allocation7], [#allocation8]
        $region20: #{tpu_custom_call.1} parent=11 // pred_fallthru
          _
        // Predicated region
        $region21: #{tpu_custom_call.1} parent=11 // pred_check
          %p277 = pneg %p89
        $region22: #{tpu_custom_call.1} parent=11 // pred_check_branch
          %279 = sbr.rel (%p277) target = $region24
        $region23: #{tpu_custom_call.1} parent=11 // pred_region
          %s281 = ssub.s32 16, 16
          %282 = vsyncadd [#allocation8], %s281
          %s284 = sshll.u32 %s2, 4
          %s285 = int_to_ptr.vmem [resolvable:$true] %s284
          %287 = dma.vmem_to_smem %s285, 16, [#allocation9], [#allocation8]
        $region24: #{tpu_custom_call.1} parent=11 // pred_fallthru
          _
        // Predicated region
        $region25: #{tpu_custom_call.1} parent=11 // pred_check
          %p288 = pneg %p110
        $region26: #{tpu_custom_call.1} parent=11 // pred_check_branch
          %290 = sbr.rel (%p288) target = $region28
        $region27: #{tpu_custom_call.1} parent=11 // pred_region
          _
        $region28: #{tpu_custom_call.1} parent=11 // pred_fallthru
          _
      $region12: #{tpu_custom_call.1} parent=5 // pred_fallthru
        _
      %p291 = scmp.lt.s32.totalorder %s26, 2
      // Predicated region
      $region29: #{tpu_custom_call.1} parent=5 // pred_check
        %p292 = pneg %p291
      $region30: #{tpu_custom_call.1} parent=5 // pred_check_branch
        %294 = sbr.rel (%p292) target = $region32
      $region31: #{tpu_custom_call.1} parent=5 // pred_region
        // Predicated region
        $region33: #{tpu_custom_call.1} parent=31 // pred_check
          %p295 = pneg %p130
        $region34: #{tpu_custom_call.1} parent=31 // pred_check_branch
          %297 = sbr.rel (%p295) target = $region36
        $region35: #{tpu_custom_call.1} parent=31 // pred_region
          %p298 = scmp.lt.s32.totalorder %s26, 1
          %s299 = scalar_select %p298, %s26, 1
          %s300 = smul.addr %s299, 8
          %s301 = scalar_lea.vmem %s4, %s300
        $region36: #{tpu_custom_call.1} parent=31 // pred_fallthru
          _
        // Predicated region
        $region37: #{tpu_custom_call.1} parent=31 // pred_check
          %p302 = pneg %p156
        $region38: #{tpu_custom_call.1} parent=31 // pred_check_branch
          %304 = sbr.rel (%p302) target = $region40
        $region39: #{tpu_custom_call.1} parent=31 // pred_region
          %p305 = scmp.lt.s32.totalorder %s26, 1
          %s306 = scalar_select %p305, %s26, 1
          %s307 = smul.addr %s306, 8
          %s308 = scalar_lea.vmem %s5, %s307
        $region40: #{tpu_custom_call.1} parent=31 // pred_fallthru
          _
        // Predicated region
        $region41: #{tpu_custom_call.1} parent=31 // pred_check
          %p309 = pneg %p182
        $region42: #{tpu_custom_call.1} parent=31 // pred_check_branch
          %311 = sbr.rel (%p309) target = $region44
        $region43: #{tpu_custom_call.1} parent=31 // pred_region
          %s312 = sand.u32 %s172, 1
          %s313 = scalar_lea.sflag [#allocation4], %s312
          %s314 = sand.u32 %s172, 1
          %s315 = smul.addr %s314, 32
          %s316 = scalar_lea.vmem [#allocation10], %s315
          %s317 = smul.u32 8, %s26
          %s319 = ssub.s32 512, 512
          %320 = vsyncadd %s313, %s319
          %s321 = smul.addr %s317, 64
          %s322 = scalar_lea.hbm %s6, %s321
          %s323 = sshll.u32 %s316, 4
          %s324 = int_to_ptr.vmem [resolvable:$true] %s323
          %329 = dma.hbm_to_vmem [thread:$0]  %s322, 512, %s324, %s313, 64, 64, 4
        $region44: #{tpu_custom_call.1} parent=31 // pred_fallthru
          _
        // Predicated region
        $region45: #{tpu_custom_call.1} parent=31 // pred_check
          %p330 = pneg %p208
        $region46: #{tpu_custom_call.1} parent=31 // pred_check_branch
          %332 = sbr.rel (%p330) target = $region48
        $region47: #{tpu_custom_call.1} parent=31 // pred_region
          %s333 = sand.u32 %s198, 1
          %s334 = scalar_lea.sflag [#allocation12], %s333
          %s335 = sand.u32 %s198, 1
          %s336 = smul.addr %s335, 64
          %s337 = scalar_lea.vmem [#allocation11], %s336
          %s338 = smul.u32 8, %s26
          %s340 = ssub.s32 1024, 1024
          %341 = vsyncadd %s334, %s340
          %s342 = smul.addr %s338, 2
          %s343 = smul.addr %s342, 64
          %s344 = scalar_lea.hbm %s7, %s343
          %s345 = sshll.u32 %s337, 4
          %s346 = int_to_ptr.vmem [resolvable:$true] %s345
          %351 = dma.hbm_to_vmem [thread:$0]  %s344, 1024, %s346, %s334, 64, 64, 4
        $region48: #{tpu_custom_call.1} parent=31 // pred_fallthru
          _
      $region32: #{tpu_custom_call.1} parent=5 // pred_fallthru
        _
      %p352 = scmp.le.s32.totalorder 1, %s26
      %p353 = scmp.lt.s32.totalorder %s26, 3
      %p354 = pnand %p352, %p353
      %p355 = pneg %p354
      // Predicated region
      $region49: #{tpu_custom_call.1} parent=5 // pred_check
        _
      $region50: #{tpu_custom_call.1} parent=5 // pred_check_branch
        %357 = sbr.rel (%p354) target = $region52
      $region51: #{tpu_custom_call.1} parent=5 // pred_region
        %s358 = ssub.s32 %s26, 1
        // Predicated region
        $region53: #{tpu_custom_call.1} parent=51 // pred_check
          %p359 = pneg %p47
        $region54: #{tpu_custom_call.1} parent=51 // pred_check_branch
          %361 = sbr.rel (%p359) target = $region56
        $region55: #{tpu_custom_call.1} parent=51 // pred_region
          %362 = dma.done [#allocation6], 16
        $region56: #{tpu_custom_call.1} parent=51 // pred_fallthru
          _
        // Predicated region
        $region57: #{tpu_custom_call.1} parent=51 // pred_check
          %p363 = pneg %p68
        $region58: #{tpu_custom_call.1} parent=51 // pred_check_branch
          %365 = sbr.rel (%p363) target = $region60
        $region59: #{tpu_custom_call.1} parent=51 // pred_region
          %366 = dma.done [#allocation8], 16
        $region60: #{tpu_custom_call.1} parent=51 // pred_fallthru
          _
        // Predicated region
        $region61: #{tpu_custom_call.1} parent=51 // pred_check
          %p367 = pneg %p89
        $region62: #{tpu_custom_call.1} parent=51 // pred_check_branch
          %369 = sbr.rel (%p367) target = $region64
        $region63: #{tpu_custom_call.1} parent=51 // pred_region
          %370 = dma.done [#allocation8], 16
        $region64: #{tpu_custom_call.1} parent=51 // pred_fallthru
          _
        %s371 = sand.u32 %s175, 1
        %s372 = scalar_lea.sflag [#allocation4], %s371
        %s373 = sand.u32 %s175, 1
        %s374 = smul.addr %s373, 32
        %s375 = scalar_lea.vmem [#allocation10], %s374
        // Predicated region
        $region65: #{tpu_custom_call.1} parent=51 // pred_check
          %p376 = pneg %p188
        $region66: #{tpu_custom_call.1} parent=51 // pred_check_branch
          %378 = sbr.rel (%p376) target = $region68
        $region67: #{tpu_custom_call.1} parent=51 // pred_region
          %379 = dma.done %s372, 512
        $region68: #{tpu_custom_call.1} parent=51 // pred_fallthru
          _
        %s380 = sand.u32 %s201, 1
        %s381 = scalar_lea.sflag [#allocation12], %s380
        %s382 = sand.u32 %s201, 1
        %s383 = smul.addr %s382, 64
        %s384 = scalar_lea.vmem [#allocation11], %s383
        // Predicated region
        $region69: #{tpu_custom_call.1} parent=51 // pred_check
          %p385 = pneg %p214
        $region70: #{tpu_custom_call.1} parent=51 // pred_check_branch
          %387 = sbr.rel (%p385) target = $region72
        $region71: #{tpu_custom_call.1} parent=51 // pred_region
          %388 = dma.done %s381, 1024
        $region72: #{tpu_custom_call.1} parent=51 // pred_fallthru
          _
        %389 = sfence
        %p390 = pneg %p47
        %p391 = pneg %p44
        %p392 = pneg %p68
        %p393 = pneg %p65
        %p394 = pneg %p89
        %p395 = pneg %p86
        %p396 = pneg %p110
        %p397 = pneg %p107
        %p398 = scmp.lt.s32.totalorder %s31, 1
        %s399 = scalar_select %p398, %s31, 1
        %s400 = smul.addr %s399, 8
        %s401 = scalar_lea.vmem %s4, %s400
        %p402 = pneg %p136
        %p403 = pneg %p133
        %p404 = scmp.lt.s32.totalorder %s31, 1
        %s405 = scalar_select %p404, %s31, 1
        %s406 = smul.addr %s405, 8
        %s407 = scalar_lea.vmem %s5, %s406
        %p408 = pneg %p162
        %p409 = pneg %p159
        %s410 = sand.u32 %s175, 1
        %s411 = scalar_lea.sflag [#allocation4], %s410
        %s412 = sand.u32 %s175, 1
        %s413 = smul.addr %s412, 32
        %s414 = scalar_lea.vmem [#allocation10], %s413
        %p415 = pneg %p188
        %p416 = pneg %p185
        %s417 = sand.u32 %s201, 1
        %s418 = scalar_lea.sflag [#allocation12], %s417
        %s419 = sand.u32 %s201, 1
        %s420 = smul.addr %s419, 64
        %s421 = scalar_lea.vmem [#allocation11], %s420
        %p422 = pneg %p214
        %p423 = pneg %p211
        %p424 = pneg %p240
        %p425 = pneg %p237
        %s426 = sand.u32 %s227, 1
        %s427 = scalar_lea.sflag [#allocation5], %s426
        %s428 = sand.u32 %s227, 1
        %s429 = scalar_lea.vmem [#allocation13], %s428
        %p430 = scmp.lt.s32.totalorder %s31, 1
        %s431 = scalar_select %p430, %s31, 1
        %s432 = smul.addr %s431, 8
        %s433 = scalar_lea.vmem %s4, %s432
        %p434 = scmp.lt.s32.totalorder %s31, 1
        %s435 = scalar_select %p434, %s31, 1
        %s436 = smul.addr %s435, 8
        %s437 = scalar_lea.vmem %s5, %s436
        %s438 = smul.u32 8, %s31
        %s439 = smul.u32 8, %s31
        %v441 = vld [vmem:[%s375] sm:$0xf]
        %v442 = vld [vmem:[%s375 + $0x4] sm:$0xf]
        %v443 = vld [vmem:[%s375 + $0x8] sm:$0xf]
        %v444 = vld [vmem:[%s375 + $0xc] sm:$0xf]
        %v445 = vld [vmem:[%s375 + $0x10] sm:$0xf]
        %v446 = vld [vmem:[%s375 + $0x14] sm:$0xf]
        %v447 = vld [vmem:[%s375 + $0x18] sm:$0xf]
        %v448 = vld [vmem:[%s375 + $0x1c] sm:$0xf]
        %v449 = vld [vmem:[%s384] sm:$0xf]
        %v450 = vld [vmem:[%s384 + $0x4] sm:$0xf]
        %v451 = vld [vmem:[%s384 + $0x8] sm:$0xf]
        %v452 = vld [vmem:[%s384 + $0xc] sm:$0xf]
        %v453 = vld [vmem:[%s384 + $0x10] sm:$0xf]
        %v454 = vld [vmem:[%s384 + $0x14] sm:$0xf]
        %v455 = vld [vmem:[%s384 + $0x18] sm:$0xf]
        %v456 = vld [vmem:[%s384 + $0x1c] sm:$0xf]
        %v457 = vld [vmem:[%s384 + $0x20] sm:$0xf]
        %v458 = vld [vmem:[%s384 + $0x24] sm:$0xf]
        %v459 = vld [vmem:[%s384 + $0x28] sm:$0xf]
        %v460 = vld [vmem:[%s384 + $0x2c] sm:$0xf]
        %v461 = vld [vmem:[%s384 + $0x30] sm:$0xf]
        %v462 = vld [vmem:[%s384 + $0x34] sm:$0xf]
        %v463 = vld [vmem:[%s384 + $0x38] sm:$0xf]
        %v464 = vld [vmem:[%s384 + $0x3c] sm:$0xf]
        %v465 = vld [vmem:[%s433] sm:$0xff]
        %v466 = vld [vmem:[%s437] sm:$0xff]
        %v469 = vunpack.c.l.b16 %v449
        %v470 = vunpack.c.l.b16 %v450
        %v471 = vpack.c.b16 %v470, %v469
        %vm472 = vcmask 261120
        %v474 = vsel %vm472, %v441, 0
        %v477 = vsel %vm472, %v471, 0
        %479 = vmatprep.subr.bf16.mxu0 0
        %480 = vmatpush1.bf16.xpose.msra.mxu0 %v477
        %481 = vmatprep.subr.bf16.mxu0 0
        %482 = vmatpush1.bf16.xpose.msra.mxu0 0
        %483 = vmatprep.subr.bf16.mxu0 0
        %484 = vmatpush1.bf16.xpose.msra.mxu0 0
        %485 = vmatprep.subr.bf16.mxu0 0
        %486 = vmatpush1.bf16.xpose.msra.mxu0 0
        %487 = vmatprep.subr.bf16.mxu0 0
        %488 = vmatpush1.bf16.xpose.msra.mxu0 0
        %489 = vmatprep.subr.bf16.mxu0 0
        %490 = vmatpush1.bf16.xpose.msra.mxu0 0
        %491 = vmatprep.subr.bf16.mxu0 0
        %492 = vmatpush1.bf16.xpose.msra.mxu0 0
        %493 = vmatprep.subr.bf16.mxu0 0
        %494 = vmatpush1.bf16.xpose.msra.mxu0 0
        %495 = vmatprep.subr.bf16.mxu0 0
        %496 = vmatpush1.bf16.xpose.msra.mxu0 0
        %497 = vmatprep.subr.bf16.mxu0 0
        %498 = vmatpush1.bf16.xpose.msra.mxu0 0
        %499 = vmatprep.subr.bf16.mxu0 0
        %500 = vmatpush1.bf16.xpose.msra.mxu0 0
        %501 = vmatprep.subr.bf16.mxu0 0
        %502 = vmatpush1.bf16.xpose.msra.mxu0 0
        %503 = vmatprep.subr.bf16.mxu0 0
        %504 = vmatpush1.bf16.xpose.msra.mxu0 0
        %505 = vmatprep.subr.bf16.mxu0 0
        %506 = vmatpush1.bf16.xpose.msra.mxu0 0
        %507 = vmatprep.subr.bf16.mxu0 0
        %508 = vmatpush1.bf16.xpose.msra.mxu0 0
        %509 = vmatprep.subr.bf16.mxu0 0
        %510 = vmatpush1.bf16.xpose.msra.mxu0 0
        %511 = vmatprep.mubr.bf16.mxu0 0
        %512 = vmatmul.mubr.bf16.gmra.mrb[0].mxu0 %v474
        %v513 = vpop.f32.mrb[0].mxu0
        %v514 = vadd.f32 0.0, %v513
        %v515 = vpop.f32.mrb[0].mxu0
        %v516 = vpop.f32.mrb[0].mxu0
        %v517 = vpop.f32.mrb[0].mxu0
        %518 = vdwg.mxu0
        %v521 = vunpack.c.l.b16 %v451
        %v522 = vunpack.c.l.b16 %v452
        %v523 = vpack.c.b16 %v522, %v521
        %v525 = vsel %vm472, %v442, 0
        %v528 = vsel %vm472, %v523, 0
        %530 = vmatprep.subr.bf16.mxu0 0
        %531 = vmatpush1.bf16.xpose.msra.mxu0 %v528
        %532 = vmatprep.subr.bf16.mxu0 0
        %533 = vmatpush1.bf16.xpose.msra.mxu0 0
        %534 = vmatprep.subr.bf16.mxu0 0
        %535 = vmatpush1.bf16.xpose.msra.mxu0 0
        %536 = vmatprep.subr.bf16.mxu0 0
        %537 = vmatpush1.bf16.xpose.msra.mxu0 0
        %538 = vmatprep.subr.bf16.mxu0 0
        %539 = vmatpush1.bf16.xpose.msra.mxu0 0
        %540 = vmatprep.subr.bf16.mxu0 0
        %541 = vmatpush1.bf16.xpose.msra.mxu0 0
        %542 = vmatprep.subr.bf16.mxu0 0
        %543 = vmatpush1.bf16.xpose.msra.mxu0 0
        %544 = vmatprep.subr.bf16.mxu0 0
        %545 = vmatpush1.bf16.xpose.msra.mxu0 0
        %546 = vmatprep.subr.bf16.mxu0 0
        %547 = vmatpush1.bf16.xpose.msra.mxu0 0
        %548 = vmatprep.subr.bf16.mxu0 0
        %549 = vmatpush1.bf16.xpose.msra.mxu0 0
        %550 = vmatprep.subr.bf16.mxu0 0
        %551 = vmatpush1.bf16.xpose.msra.mxu0 0
        %552 = vmatprep.subr.bf16.mxu0 0
        %553 = vmatpush1.bf16.xpose.msra.mxu0 0
        %554 = vmatprep.subr.bf16.mxu0 0
        %555 = vmatpush1.bf16.xpose.msra.mxu0 0
        %556 = vmatprep.subr.bf16.mxu0 0
        %557 = vmatpush1.bf16.xpose.msra.mxu0 0
        %558 = vmatprep.subr.bf16.mxu0 0
        %559 = vmatpush1.bf16.xpose.msra.mxu0 0
        %560 = vmatprep.subr.bf16.mxu0 0
        %561 = vmatpush1.bf16.xpose.msra.mxu0 0
        %562 = vmatprep.mubr.bf16.mxu0 0
        %563 = vmatmul.mubr.bf16.gmra.mrb[0].mxu0 %v525
        %v564 = vpop.f32.mrb[0].mxu0
        %v565 = vadd.f32 0.0, %v564
        %v566 = vpop.f32.mrb[0].mxu0
        %v567 = vpop.f32.mrb[0].mxu0
        %v568 = vpop.f32.mrb[0].mxu0
        %569 = vdwg.mxu0
        %v572 = vunpack.c.l.b16 %v453
        %v573 = vunpack.c.l.b16 %v454
        %v574 = vpack.c.b16 %v573, %v572
        %v576 = vsel %vm472, %v443, 0
        %v579 = vsel %vm472, %v574, 0
        %581 = vmatprep.subr.bf16.mxu0 0
        %582 = vmatpush1.bf16.xpose.msra.mxu0 %v579
        %583 = vmatprep.subr.bf16.mxu0 0
        %584 = vmatpush1.bf16.xpose.msra.mxu0 0
        %585 = vmatprep.subr.bf16.mxu0 0
        %586 = vmatpush1.bf16.xpose.msra.mxu0 0
        %587 = vmatprep.subr.bf16.mxu0 0
        %588 = vmatpush1.bf16.xpose.msra.mxu0 0
        %589 = vmatprep.subr.bf16.mxu0 0
        %590 = vmatpush1.bf16.xpose.msra.mxu0 0
        %591 = vmatprep.subr.bf16.mxu0 0
        %592 = vmatpush1.bf16.xpose.msra.mxu0 0
        %593 = vmatprep.subr.bf16.mxu0 0
        %594 = vmatpush1.bf16.xpose.msra.mxu0 0
        %595 = vmatprep.subr.bf16.mxu0 0
        %596 = vmatpush1.bf16.xpose.msra.mxu0 0
        %597 = vmatprep.subr.bf16.mxu0 0
        %598 = vmatpush1.bf16.xpose.msra.mxu0 0
        %599 = vmatprep.subr.bf16.mxu0 0
        %600 = vmatpush1.bf16.xpose.msra.mxu0 0
        %601 = vmatprep.subr.bf16.mxu0 0
        %602 = vmatpush1.bf16.xpose.msra.mxu0 0
        %603 = vmatprep.subr.bf16.mxu0 0
        %604 = vmatpush1.bf16.xpose.msra.mxu0 0
        %605 = vmatprep.subr.bf16.mxu0 0
        %606 = vmatpush1.bf16.xpose.msra.mxu0 0
        %607 = vmatprep.subr.bf16.mxu0 0
        %608 = vmatpush1.bf16.xpose.msra.mxu0 0
        %609 = vmatprep.subr.bf16.mxu0 0
        %610 = vmatpush1.bf16.xpose.msra.mxu0 0
        %611 = vmatprep.subr.bf16.mxu0 0
        %612 = vmatpush1.bf16.xpose.msra.mxu0 0
        %613 = vmatprep.mubr.bf16.mxu0 0
        %614 = vmatmul.mubr.bf16.gmra.mrb[0].mxu0 %v576
        %v615 = vpop.f32.mrb[0].mxu0
        %v616 = vadd.f32 0.0, %v615
        %v617 = vpop.f32.mrb[0].mxu0
        %v618 = vpop.f32.mrb[0].mxu0
        %v619 = vpop.f32.mrb[0].mxu0
        %620 = vdwg.mxu0
        %v623 = vunpack.c.l.b16 %v455
        %v624 = vunpack.c.l.b16 %v456
        %v625 = vpack.c.b16 %v624, %v623
        %v627 = vsel %vm472, %v444, 0
        %v630 = vsel %vm472, %v625, 0
        %632 = vmatprep.subr.bf16.mxu0 0
        %633 = vmatpush1.bf16.xpose.msra.mxu0 %v630
        %634 = vmatprep.subr.bf16.mxu0 0
        %635 = vmatpush1.bf16.xpose.msra.mxu0 0
        %636 = vmatprep.subr.bf16.mxu0 0
        %637 = vmatpush1.bf16.xpose.msra.mxu0 0
        %638 = vmatprep.subr.bf16.mxu0 0
        %639 = vmatpush1.bf16.xpose.msra.mxu0 0
        %640 = vmatprep.subr.bf16.mxu0 0
        %641 = vmatpush1.bf16.xpose.msra.mxu0 0
        %642 = vmatprep.subr.bf16.mxu0 0
        %643 = vmatpush1.bf16.xpose.msra.mxu0 0
        %644 = vmatprep.subr.bf16.mxu0 0
        %645 = vmatpush1.bf16.xpose.msra.mxu0 0
        %646 = vmatprep.subr.bf16.mxu0 0
        %647 = vmatpush1.bf16.xpose.msra.mxu0 0
        %648 = vmatprep.subr.bf16.mxu0 0
        %649 = vmatpush1.bf16.xpose.msra.mxu0 0
        %650 = vmatprep.subr.bf16.mxu0 0
        %651 = vmatpush1.bf16.xpose.msra.mxu0 0
        %652 = vmatprep.subr.bf16.mxu0 0
        %653 = vmatpush1.bf16.xpose.msra.mxu0 0
        %654 = vmatprep.subr.bf16.mxu0 0
        %655 = vmatpush1.bf16.xpose.msra.mxu0 0
        %656 = vmatprep.subr.bf16.mxu0 0
        %657 = vmatpush1.bf16.xpose.msra.mxu0 0
        %658 = vmatprep.subr.bf16.mxu0 0
        %659 = vmatpush1.bf16.xpose.msra.mxu0 0
        %660 = vmatprep.subr.bf16.mxu0 0
        %661 = vmatpush1.bf16.xpose.msra.mxu0 0
        %662 = vmatprep.subr.bf16.mxu0 0
        %663 = vmatpush1.bf16.xpose.msra.mxu0 0
        %664 = vmatprep.mubr.bf16.mxu0 0
        %665 = vmatmul.mubr.bf16.gmra.mrb[0].mxu0 %v627
        %v666 = vpop.f32.mrb[0].mxu0
        %v667 = vadd.f32 0.0, %v666
        %v668 = vpop.f32.mrb[0].mxu0
        %v669 = vpop.f32.mrb[0].mxu0
        %v670 = vpop.f32.mrb[0].mxu0
        %671 = vdwg.mxu0
        %v674 = vunpack.c.l.b16 %v457
        %v675 = vunpack.c.l.b16 %v458
        %v676 = vpack.c.b16 %v675, %v674
        %v678 = vsel %vm472, %v445, 0
        %v681 = vsel %vm472, %v676, 0
        %683 = vmatprep.subr.bf16.mxu0 0
        %684 = vmatpush1.bf16.xpose.msra.mxu0 %v681
        %685 = vmatprep.subr.bf16.mxu0 0
        %686 = vmatpush1.bf16.xpose.msra.mxu0 0
        %687 = vmatprep.subr.bf16.mxu0 0
        %688 = vmatpush1.bf16.xpose.msra.mxu0 0
        %689 = vmatprep.subr.bf16.mxu0 0
        %690 = vmatpush1.bf16.xpose.msra.mxu0 0
        %691 = vmatprep.subr.bf16.mxu0 0
        %692 = vmatpush1.bf16.xpose.msra.mxu0 0
        %693 = vmatprep.subr.bf16.mxu0 0
        %694 = vmatpush1.bf16.xpose.msra.mxu0 0
        %695 = vmatprep.subr.bf16.mxu0 0
        %696 = vmatpush1.bf16.xpose.msra.mxu0 0
        %697 = vmatprep.subr.bf16.mxu0 0
        %698 = vmatpush1.bf16.xpose.msra.mxu0 0
        %699 = vmatprep.subr.bf16.mxu0 0
        %700 = vmatpush1.bf16.xpose.msra.mxu0 0
        %701 = vmatprep.subr.bf16.mxu0 0
        %702 = vmatpush1.bf16.xpose.msra.mxu0 0
        %703 = vmatprep.subr.bf16.mxu0 0
        %704 = vmatpush1.bf16.xpose.msra.mxu0 0
        %705 = vmatprep.subr.bf16.mxu0 0
        %706 = vmatpush1.bf16.xpose.msra.mxu0 0
        %707 = vmatprep.subr.bf16.mxu0 0
        %708 = vmatpush1.bf16.xpose.msra.mxu0 0
        %709 = vmatprep.subr.bf16.mxu0 0
        %710 = vmatpush1.bf16.xpose.msra.mxu0 0
        %711 = vmatprep.subr.bf16.mxu0 0
        %712 = vmatpush1.bf16.xpose.msra.mxu0 0
        %713 = vmatprep.subr.bf16.mxu0 0
        %714 = vmatpush1.bf16.xpose.msra.mxu0 0
        %715 = vmatprep.mubr.bf16.mxu0 0
        %716 = vmatmul.mubr.bf16.gmra.mrb[0].mxu0 %v678
        %v717 = vpop.f32.mrb[0].mxu0
        %v718 = vadd.f32 0.0, %v717
        %v719 = vpop.f32.mrb[0].mxu0
        %v720 = vpop.f32.mrb[0].mxu0
        %v721 = vpop.f32.mrb[0].mxu0
        %722 = vdwg.mxu0
        %v725 = vunpack.c.l.b16 %v459
        %v726 = vunpack.c.l.b16 %v460
        %v727 = vpack.c.b16 %v726, %v725
        %v729 = vsel %vm472, %v446, 0
        %v732 = vsel %vm472, %v727, 0
        %734 = vmatprep.subr.bf16.mxu0 0
        %735 = vmatpush1.bf16.xpose.msra.mxu0 %v732
        %736 = vmatprep.subr.bf16.mxu0 0
        %737 = vmatpush1.bf16.xpose.msra.mxu0 0
        %738 = vmatprep.subr.bf16.mxu0 0
        %739 = vmatpush1.bf16.xpose.msra.mxu0 0
        %740 = vmatprep.subr.bf16.mxu0 0
        %741 = vmatpush1.bf16.xpose.msra.mxu0 0
        %742 = vmatprep.subr.bf16.mxu0 0
        %743 = vmatpush1.bf16.xpose.msra.mxu0 0
        %744 = vmatprep.subr.bf16.mxu0 0
        %745 = vmatpush1.bf16.xpose.msra.mxu0 0
        %746 = vmatprep.subr.bf16.mxu0 0
        %747 = vmatpush1.bf16.xpose.msra.mxu0 0
        %748 = vmatprep.subr.bf16.mxu0 0
        %749 = vmatpush1.bf16.xpose.msra.mxu0 0
        %750 = vmatprep.subr.bf16.mxu0 0
        %751 = vmatpush1.bf16.xpose.msra.mxu0 0
        %752 = vmatprep.subr.bf16.mxu0 0
        %753 = vmatpush1.bf16.xpose.msra.mxu0 0
        %754 = vmatprep.subr.bf16.mxu0 0
        %755 = vmatpush1.bf16.xpose.msra.mxu0 0
        %756 = vmatprep.subr.bf16.mxu0 0
        %757 = vmatpush1.bf16.xpose.msra.mxu0 0
        %758 = vmatprep.subr.bf16.mxu0 0
        %759 = vmatpush1.bf16.xpose.msra.mxu0 0
        %760 = vmatprep.subr.bf16.mxu0 0
        %761 = vmatpush1.bf16.xpose.msra.mxu0 0
        %762 = vmatprep.subr.bf16.mxu0 0
        %763 = vmatpush1.bf16.xpose.msra.mxu0 0
        %764 = vmatprep.subr.bf16.mxu0 0
        %765 = vmatpush1.bf16.xpose.msra.mxu0 0
        %766 = vmatprep.mubr.bf16.mxu0 0
        %767 = vmatmul.mubr.bf16.gmra.mrb[0].mxu0 %v729
        %v768 = vpop.f32.mrb[0].mxu0
        %v769 = vadd.f32 0.0, %v768
        %v770 = vpop.f32.mrb[0].mxu0
        %v771 = vpop.f32.mrb[0].mxu0
        %v772 = vpop.f32.mrb[0].mxu0
        %773 = vdwg.mxu0
        %v776 = vunpack.c.l.b16 %v461
        %v777 = vunpack.c.l.b16 %v462
        %v778 = vpack.c.b16 %v777, %v776
        %v780 = vsel %vm472, %v447, 0
        %v783 = vsel %vm472, %v778, 0
        %785 = vmatprep.subr.bf16.mxu0 0
        %786 = vmatpush1.bf16.xpose.msra.mxu0 %v783
        %787 = vmatprep.subr.bf16.mxu0 0
        %788 = vmatpush1.bf16.xpose.msra.mxu0 0
        %789 = vmatprep.subr.bf16.mxu0 0
        %790 = vmatpush1.bf16.xpose.msra.mxu0 0
        %791 = vmatprep.subr.bf16.mxu0 0
        %792 = vmatpush1.bf16.xpose.msra.mxu0 0
        %793 = vmatprep.subr.bf16.mxu0 0
        %794 = vmatpush1.bf16.xpose.msra.mxu0 0
        %795 = vmatprep.subr.bf16.mxu0 0
        %796 = vmatpush1.bf16.xpose.msra.mxu0 0
        %797 = vmatprep.subr.bf16.mxu0 0
        %798 = vmatpush1.bf16.xpose.msra.mxu0 0
        %799 = vmatprep.subr.bf16.mxu0 0
        %800 = vmatpush1.bf16.xpose.msra.mxu0 0
        %801 = vmatprep.subr.bf16.mxu0 0
        %802 = vmatpush1.bf16.xpose.msra.mxu0 0
        %803 = vmatprep.subr.bf16.mxu0 0
        %804 = vmatpush1.bf16.xpose.msra.mxu0 0
        %805 = vmatprep.subr.bf16.mxu0 0
        %806 = vmatpush1.bf16.xpose.msra.mxu0 0
        %807 = vmatprep.subr.bf16.mxu0 0
        %808 = vmatpush1.bf16.xpose.msra.mxu0 0
        %809 = vmatprep.subr.bf16.mxu0 0
        %810 = vmatpush1.bf16.xpose.msra.mxu0 0
        %811 = vmatprep.subr.bf16.mxu0 0
        %812 = vmatpush1.bf16.xpose.msra.mxu0 0
        %813 = vmatprep.subr.bf16.mxu0 0
        %814 = vmatpush1.bf16.xpose.msra.mxu0 0
        %815 = vmatprep.subr.bf16.mxu0 0
        %816 = vmatpush1.bf16.xpose.msra.mxu0 0
        %817 = vmatprep.mubr.bf16.mxu0 0
        %818 = vmatmul.mubr.bf16.gmra.mrb[0].mxu0 %v780
        %v819 = vpop.f32.mrb[0].mxu0
        %v820 = vadd.f32 0.0, %v819
        %v821 = vpop.f32.mrb[0].mxu0
        %v822 = vpop.f32.mrb[0].mxu0
        %v823 = vpop.f32.mrb[0].mxu0
        %824 = vdwg.mxu0
        %v827 = vunpack.c.l.b16 %v463
        %v828 = vunpack.c.l.b16 %v464
        %v829 = vpack.c.b16 %v828, %v827
        %v831 = vsel %vm472, %v448, 0
        %v834 = vsel %vm472, %v829, 0
        %836 = vmatprep.subr.bf16.mxu0 0
        %837 = vmatpush1.bf16.xpose.msra.mxu0 %v834
        %838 = vmatprep.subr.bf16.mxu0 0
        %839 = vmatpush1.bf16.xpose.msra.mxu0 0
        %840 = vmatprep.subr.bf16.mxu0 0
        %841 = vmatpush1.bf16.xpose.msra.mxu0 0
        %842 = vmatprep.subr.bf16.mxu0 0
        %843 = vmatpush1.bf16.xpose.msra.mxu0 0
        %844 = vmatprep.subr.bf16.mxu0 0
        %845 = vmatpush1.bf16.xpose.msra.mxu0 0
        %846 = vmatprep.subr.bf16.mxu0 0
        %847 = vmatpush1.bf16.xpose.msra.mxu0 0
        %848 = vmatprep.subr.bf16.mxu0 0
        %849 = vmatpush1.bf16.xpose.msra.mxu0 0
        %850 = vmatprep.subr.bf16.mxu0 0
        %851 = vmatpush1.bf16.xpose.msra.mxu0 0
        %852 = vmatprep.subr.bf16.mxu0 0
        %853 = vmatpush1.bf16.xpose.msra.mxu0 0
        %854 = vmatprep.subr.bf16.mxu0 0
        %855 = vmatpush1.bf16.xpose.msra.mxu0 0
        %856 = vmatprep.subr.bf16.mxu0 0
        %857 = vmatpush1.bf16.xpose.msra.mxu0 0
        %858 = vmatprep.subr.bf16.mxu0 0
        %859 = vmatpush1.bf16.xpose.msra.mxu0 0
        %860 = vmatprep.subr.bf16.mxu0 0
        %861 = vmatpush1.bf16.xpose.msra.mxu0 0
        %862 = vmatprep.subr.bf16.mxu0 0
        %863 = vmatpush1.bf16.xpose.msra.mxu0 0
        %864 = vmatprep.subr.bf16.mxu0 0
        %865 = vmatpush1.bf16.xpose.msra.mxu0 0
        %866 = vmatprep.subr.bf16.mxu0 0
        %867 = vmatpush1.bf16.xpose.msra.mxu0 0
        %868 = vmatprep.mubr.bf16.mxu0 0
        %869 = vmatmul.mubr.bf16.gmra.mrb[0].mxu0 %v831
        %v870 = vpop.f32.mrb[0].mxu0
        %v871 = vadd.f32 0.0, %v870
        %v872 = vpop.f32.mrb[0].mxu0
        %v873 = vpop.f32.mrb[0].mxu0
        %v874 = vpop.f32.mrb[0].mxu0
        %875 = vdwg.mxu0
        %v877 = vcombine.high %v466, %v466
        %v879 = vunpack.c.l.s4 1966171168
        %v880 = vunpack.c.0.s8 %v879
        %v881 = vlaneseq
        %v882 = vshrl.u32 %v881, 7
        %v883 = vsub.s32 %v880, %v882
        %v884 = vrot.slane %v466, %v883
        %v886 = vunpack.c.l.s4 1966171168
        %v887 = vunpack.c.0.s8 %v886
        %v888 = vlaneseq
        %v889 = vshrl.u32 %v888, 7
        %v890 = vsub.s32 %v887, %v889
        %v891 = vrot.slane %v877, %v890
        %v892 = vcombine.high %v884, %v884
        %v893 = vcombine.high %v891, %v891
        %v895 = vunpack.c.l.s4 1966171168
        %v896 = vunpack.c.0.s8 %v895
        %v897 = vlaneseq
        %v898 = vshrl.u32 %v897, 7
        %v899 = vsub.s32 %v896, %v898
        %v900 = vrot.slane %v884, %v899
        %v902 = vunpack.c.l.s4 1966171168
        %v903 = vunpack.c.0.s8 %v902
        %v904 = vlaneseq
        %v905 = vshrl.u32 %v904, 7
        %v906 = vsub.s32 %v903, %v905
        %v907 = vrot.slane %v891, %v906
        %v909 = vunpack.c.l.s4 1966171168
        %v910 = vunpack.c.0.s8 %v909
        %v911 = vlaneseq
        %v912 = vshrl.u32 %v911, 7
        %v913 = vsub.s32 %v910, %v912
        %v914 = vrot.slane %v892, %v913
        %v916 = vunpack.c.l.s4 1966171168
        %v917 = vunpack.c.0.s8 %v916
        %v918 = vlaneseq
        %v919 = vshrl.u32 %v918, 7
        %v920 = vsub.s32 %v917, %v919
        %v921 = vrot.slane %v893, %v920
        %v922 = vcombine.high %v900, %v900
        %v923 = vcombine.high %v907, %v907
        %v924 = vcombine.high %v914, %v914
        %v925 = vcombine.high %v921, %v921
        %vm934 = vcmp.gt.f32.partialorder %v900, 0.0
        %vm935 = vcmp.gt.f32.partialorder %v914, 0.0
        %vm936 = vcmp.gt.f32.partialorder %v922, 0.0
        %vm937 = vcmp.gt.f32.partialorder %v924, 0.0
        %vm938 = vcmp.gt.f32.partialorder %v907, 0.0
        %vm939 = vcmp.gt.f32.partialorder %v921, 0.0
        %vm940 = vcmp.gt.f32.partialorder %v923, 0.0
        %vm941 = vcmp.gt.f32.partialorder %v925, 0.0
        %v942 = vsel %vm934, 1, 0
        %v943 = vsel %vm935, 1, 0
        %v944 = vsel %vm936, 1, 0
        %v945 = vsel %vm937, 1, 0
        %v946 = vsel %vm938, 1, 0
        %v947 = vsel %vm939, 1, 0
        %v948 = vsel %vm940, 1, 0
        %v949 = vsel %vm941, 1, 0
        %v950 = vlaneseq
        %v951 = vshrl.u32 %v950, 7
        %v952 = vsub.s32 0, %v951
        %v953 = vrot.slane %v942, %v952
        %v954 = vlaneseq
        %v955 = vshrl.u32 %v954, 7
        %v956 = vsub.s32 0, %v955
        %v957 = vrot.slane %v943, %v956
        %v958 = vlaneseq
        %v959 = vshrl.u32 %v958, 7
        %v960 = vsub.s32 0, %v959
        %v961 = vrot.slane %v944, %v960
        %v962 = vlaneseq
        %v963 = vshrl.u32 %v962, 7
        %v964 = vsub.s32 0, %v963
        %v965 = vrot.slane %v945, %v964
        %v966 = vlaneseq
        %v967 = vshrl.u32 %v966, 7
        %v968 = vsub.s32 0, %v967
        %v969 = vrot.slane %v946, %v968
        %v970 = vlaneseq
        %v971 = vshrl.u32 %v970, 7
        %v972 = vsub.s32 0, %v971
        %v973 = vrot.slane %v947, %v972
        %v974 = vlaneseq
        %v975 = vshrl.u32 %v974, 7
        %v976 = vsub.s32 0, %v975
        %v977 = vrot.slane %v948, %v976
        %v978 = vlaneseq
        %v979 = vshrl.u32 %v978, 7
        %v980 = vsub.s32 0, %v979
        %v981 = vrot.slane %v949, %v980
        %vm982 = vcmp.eq.s32.totalorder %v953, 1
        %vm983 = vcmp.eq.s32.totalorder %v957, 1
        %vm984 = vcmp.eq.s32.totalorder %v961, 1
        %vm985 = vcmp.eq.s32.totalorder %v965, 1
        %vm986 = vcmp.eq.s32.totalorder %v969, 1
        %vm987 = vcmp.eq.s32.totalorder %v973, 1
        %vm988 = vcmp.eq.s32.totalorder %v977, 1
        %vm989 = vcmp.eq.s32.totalorder %v981, 1
        %v990 = vsel %vm982, %v514, -10000.0
        %v991 = vsel %vm983, %v565, -10000.0
        %v992 = vsel %vm984, %v616, -10000.0
        %v993 = vsel %vm985, %v667, -10000.0
        %v994 = vsel %vm986, %v718, -10000.0
        %v995 = vsel %vm987, %v769, -10000.0
        %v996 = vsel %vm988, %v820, -10000.0
        %v997 = vsel %vm989, %v871, -10000.0
        %s998 = sld [smem:[#allocation3]]
        %s999 = sld [smem:[#allocation7]]
        %v1000 = vstv %s998
        %v1001 = vsub.f32 %v990, %v1000
        %v1002 = vsub.f32 %v991, %v1000
        %v1003 = vsub.f32 %v992, %v1000
        %v1004 = vsub.f32 %v993, %v1000
        %v1005 = vsub.f32 %v994, %v1000
        %v1006 = vsub.f32 %v995, %v1000
        %v1007 = vsub.f32 %v996, %v1000
        %v1008 = vsub.f32 %v997, %v1000
        %v1009 = vstv %s999
        %v1010 = vmul.f32 %v1009, %v1001
        %v1011 = vmul.f32 %v1009, %v1002
        %v1012 = vmul.f32 %v1009, %v1003
        %v1013 = vmul.f32 %v1009, %v1004
        %v1014 = vmul.f32 %v1009, %v1005
        %v1015 = vmul.f32 %v1009, %v1006
        %v1016 = vmul.f32 %v1009, %v1007
        %v1017 = vmul.f32 %v1009, %v1008
        %v1018 = vmul.f32 %v1010, %v1001
        %v1019 = vmul.f32 %v1011, %v1002
        %v1020 = vmul.f32 %v1012, %v1003
        %v1021 = vmul.f32 %v1013, %v1004
        %v1022 = vmul.f32 %v1014, %v1005
        %v1023 = vmul.f32 %v1015, %v1006
        %v1024 = vmul.f32 %v1016, %v1007
        %v1025 = vmul.f32 %v1017, %v1008
        %v1026 = vmul.f32 %v1018, 1.442695
        %v1027 = vpow.pop %v1026
        %v1028 = vmul.f32 %v1019, 1.442695
        %v1029 = vpow.pop %v1028
        %v1030 = vmul.f32 %v1020, 1.442695
        %v1031 = vpow.pop %v1030
        %v1032 = vmul.f32 %v1021, 1.442695
        %v1033 = vpow.pop %v1032
        %v1034 = vmul.f32 %v1022, 1.442695
        %v1035 = vpow.pop %v1034
        %v1036 = vmul.f32 %v1023, 1.442695
        %v1037 = vpow.pop %v1036
        %v1038 = vmul.f32 %v1024, 1.442695
        %v1039 = vpow.pop %v1038
        %v1040 = vmul.f32 %v1025, 1.442695
        %v1041 = vpow.pop %v1040
        %vm1042 = vcmask 130048
        %v1043 = vsel %vm1042, %v1027, 0.0
        %1044 = vadd.xlane.f32.xlu0 %v1043
        %v1045 = vpop.xlane.xlu0 %1044
        %v1046 = vsel %vm1042, %v1029, 0.0
        %1047 = vadd.xlane.f32.xlu0 %v1046
        %v1048 = vpop.xlane.xlu0 %1047
        %v1049 = vsel %vm1042, %v1031, 0.0
        %1050 = vadd.xlane.f32.xlu0 %v1049
        %v1051 = vpop.xlane.xlu0 %1050
        %v1052 = vsel %vm1042, %v1033, 0.0
        %1053 = vadd.xlane.f32.xlu0 %v1052
        %v1054 = vpop.xlane.xlu0 %1053
        %v1055 = vsel %vm1042, %v1035, 0.0
        %1056 = vadd.xlane.f32.xlu0 %v1055
        %v1057 = vpop.xlane.xlu0 %1056
        %v1058 = vsel %vm1042, %v1037, 0.0
        %1059 = vadd.xlane.f32.xlu0 %v1058
        %v1060 = vpop.xlane.xlu0 %1059
        %v1061 = vsel %vm1042, %v1039, 0.0
        %1062 = vadd.xlane.f32.xlu0 %v1061
        %v1063 = vpop.xlane.xlu0 %1062
        %v1064 = vsel %vm1042, %v1041, 0.0
        %1065 = vadd.xlane.f32.xlu0 %v1064
        %v1066 = vpop.xlane.xlu0 %1065
        %s1067 = sld [smem:[#allocation9]]
        %v1068 = vmax.f32 %v1045, 1e-10
        %v1069 = vmax.f32 %v1048, 1e-10
        %v1070 = vmax.f32 %v1051, 1e-10
        %v1071 = vmax.f32 %v1054, 1e-10
        %v1072 = vmax.f32 %v1057, 1e-10
        %v1073 = vmax.f32 %v1060, 1e-10
        %v1074 = vmax.f32 %v1063, 1e-10
        %v1075 = vmax.f32 %v1066, 1e-10
        %v1076 = vlog2.pop %v1068
        %v1077 = vmul.f32 %v1076, 0.6931472
        %v1078 = vlog2.pop %v1069
        %v1079 = vmul.f32 %v1078, 0.6931472
        %v1080 = vlog2.pop %v1070
        %v1081 = vmul.f32 %v1080, 0.6931472
        %v1082 = vlog2.pop %v1071
        %v1083 = vmul.f32 %v1082, 0.6931472
        %v1084 = vlog2.pop %v1072
        %v1085 = vmul.f32 %v1084, 0.6931472
        %v1086 = vlog2.pop %v1073
        %v1087 = vmul.f32 %v1086, 0.6931472
        %v1088 = vlog2.pop %v1074
        %v1089 = vmul.f32 %v1088, 0.6931472
        %v1090 = vlog2.pop %v1075
        %v1091 = vmul.f32 %v1090, 0.6931472
        %v1092 = vstv %s1067
        %v1093 = vmul.f32 %v1092, %v1077
        %v1094 = vmul.f32 %v1092, %v1079
        %v1095 = vmul.f32 %v1092, %v1081
        %v1096 = vmul.f32 %v1092, %v1083
        %v1097 = vmul.f32 %v1092, %v1085
        %v1098 = vmul.f32 %v1092, %v1087
        %v1099 = vmul.f32 %v1092, %v1089
        %v1100 = vmul.f32 %v1092, %v1091
        %v1101 = vadd.f32 %v1093, 0.0
        %v1102 = vadd.f32 %v1094, 0.0
        %v1103 = vadd.f32 %v1095, 0.0
        %v1104 = vadd.f32 %v1096, 0.0
        %v1105 = vadd.f32 %v1097, 0.0
        %v1106 = vadd.f32 %v1098, 0.0
        %v1107 = vadd.f32 %v1099, 0.0
        %v1108 = vadd.f32 %v1100, 0.0
        %s1109 = sld [smem:[#allocation3 + $0x1]]
        %s1110 = sld [smem:[#allocation7 + $0x1]]
        %v1111 = vstv %s1109
        %v1112 = vsub.f32 %v990, %v1111
        %v1113 = vsub.f32 %v991, %v1111
        %v1114 = vsub.f32 %v992, %v1111
        %v1115 = vsub.f32 %v993, %v1111
        %v1116 = vsub.f32 %v994, %v1111
        %v1117 = vsub.f32 %v995, %v1111
        %v1118 = vsub.f32 %v996, %v1111
        %v1119 = vsub.f32 %v997, %v1111
        %v1120 = vstv %s1110
        %v1121 = vmul.f32 %v1120, %v1112
        %v1122 = vmul.f32 %v1120, %v1113
        %v1123 = vmul.f32 %v1120, %v1114
        %v1124 = vmul.f32 %v1120, %v1115
        %v1125 = vmul.f32 %v1120, %v1116
        %v1126 = vmul.f32 %v1120, %v1117
        %v1127 = vmul.f32 %v1120, %v1118
        %v1128 = vmul.f32 %v1120, %v1119
        %v1129 = vmul.f32 %v1121, %v1112
        %v1130 = vmul.f32 %v1122, %v1113
        %v1131 = vmul.f32 %v1123, %v1114
        %v1132 = vmul.f32 %v1124, %v1115
        %v1133 = vmul.f32 %v1125, %v1116
        %v1134 = vmul.f32 %v1126, %v1117
        %v1135 = vmul.f32 %v1127, %v1118
        %v1136 = vmul.f32 %v1128, %v1119
        %v1137 = vmul.f32 %v1129, 1.442695
        %v1138 = vpow.pop %v1137
        %v1139 = vmul.f32 %v1130, 1.442695
        %v1140 = vpow.pop %v1139
        %v1141 = vmul.f32 %v1131, 1.442695
        %v1142 = vpow.pop %v1141
        %v1143 = vmul.f32 %v1132, 1.442695
        %v1144 = vpow.pop %v1143
        %v1145 = vmul.f32 %v1133, 1.442695
        %v1146 = vpow.pop %v1145
        %v1147 = vmul.f32 %v1134, 1.442695
        %v1148 = vpow.pop %v1147
        %v1149 = vmul.f32 %v1135, 1.442695
        %v1150 = vpow.pop %v1149
        %v1151 = vmul.f32 %v1136, 1.442695
        %v1152 = vpow.pop %v1151
        %v1153 = vsel %vm1042, %v1138, 0.0
        %1154 = vadd.xlane.f32.xlu0 %v1153
        %v1155 = vpop.xlane.xlu0 %1154
        %v1156 = vsel %vm1042, %v1140, 0.0
        %1157 = vadd.xlane.f32.xlu0 %v1156
        %v1158 = vpop.xlane.xlu0 %1157
        %v1159 = vsel %vm1042, %v1142, 0.0
        %1160 = vadd.xlane.f32.xlu0 %v1159
        %v1161 = vpop.xlane.xlu0 %1160
        %v1162 = vsel %vm1042, %v1144, 0.0
        %1163 = vadd.xlane.f32.xlu0 %v1162
        %v1164 = vpop.xlane.xlu0 %1163
        %v1165 = vsel %vm1042, %v1146, 0.0
        %1166 = vadd.xlane.f32.xlu0 %v1165
        %v1167 = vpop.xlane.xlu0 %1166
        %v1168 = vsel %vm1042, %v1148, 0.0
        %1169 = vadd.xlane.f32.xlu0 %v1168
        %v1170 = vpop.xlane.xlu0 %1169
        %v1171 = vsel %vm1042, %v1150, 0.0
        %1172 = vadd.xlane.f32.xlu0 %v1171
        %v1173 = vpop.xlane.xlu0 %1172
        %v1174 = vsel %vm1042, %v1152, 0.0
        %1175 = vadd.xlane.f32.xlu0 %v1174
        %v1176 = vpop.xlane.xlu0 %1175
        %s1177 = sld [smem:[#allocation9 + $0x1]]
        %v1178 = vmax.f32 %v1155, 1e-10
        %v1179 = vmax.f32 %v1158, 1e-10
        %v1180 = vmax.f32 %v1161, 1e-10
        %v1181 = vmax.f32 %v1164, 1e-10
        %v1182 = vmax.f32 %v1167, 1e-10
        %v1183 = vmax.f32 %v1170, 1e-10
        %v1184 = vmax.f32 %v1173, 1e-10
        %v1185 = vmax.f32 %v1176, 1e-10
        %v1186 = vlog2.pop %v1178
        %v1187 = vmul.f32 %v1186, 0.6931472
        %v1188 = vlog2.pop %v1179
        %v1189 = vmul.f32 %v1188, 0.6931472
        %v1190 = vlog2.pop %v1180
        %v1191 = vmul.f32 %v1190, 0.6931472
        %v1192 = vlog2.pop %v1181
        %v1193 = vmul.f32 %v1192, 0.6931472
        %v1194 = vlog2.pop %v1182
        %v1195 = vmul.f32 %v1194, 0.6931472
        %v1196 = vlog2.pop %v1183
        %v1197 = vmul.f32 %v1196, 0.6931472
        %v1198 = vlog2.pop %v1184
        %v1199 = vmul.f32 %v1198, 0.6931472
        %v1200 = vlog2.pop %v1185
        %v1201 = vmul.f32 %v1200, 0.6931472
        %v1202 = vstv %s1177
        %v1203 = vmul.f32 %v1202, %v1187
        %v1204 = vmul.f32 %v1202, %v1189
        %v1205 = vmul.f32 %v1202, %v1191
        %v1206 = vmul.f32 %v1202, %v1193
        %v1207 = vmul.f32 %v1202, %v1195
        %v1208 = vmul.f32 %v1202, %v1197
        %v1209 = vmul.f32 %v1202, %v1199
        %v1210 = vmul.f32 %v1202, %v1201
        %v1211 = vadd.f32 %v1101, %v1203
        %v1212 = vadd.f32 %v1102, %v1204
        %v1213 = vadd.f32 %v1103, %v1205
        %v1214 = vadd.f32 %v1104, %v1206
        %v1215 = vadd.f32 %v1105, %v1207
        %v1216 = vadd.f32 %v1106, %v1208
        %v1217 = vadd.f32 %v1107, %v1209
        %v1218 = vadd.f32 %v1108, %v1210
        %s1219 = sld [smem:[#allocation3 + $0x2]]
        %s1220 = sld [smem:[#allocation7 + $0x2]]
        %v1221 = vstv %s1219
        %v1222 = vsub.f32 %v990, %v1221
        %v1223 = vsub.f32 %v991, %v1221
        %v1224 = vsub.f32 %v992, %v1221
        %v1225 = vsub.f32 %v993, %v1221
        %v1226 = vsub.f32 %v994, %v1221
        %v1227 = vsub.f32 %v995, %v1221
        %v1228 = vsub.f32 %v996, %v1221
        %v1229 = vsub.f32 %v997, %v1221
        %v1230 = vstv %s1220
        %v1231 = vmul.f32 %v1230, %v1222
        %v1232 = vmul.f32 %v1230, %v1223
        %v1233 = vmul.f32 %v1230, %v1224
        %v1234 = vmul.f32 %v1230, %v1225
        %v1235 = vmul.f32 %v1230, %v1226
        %v1236 = vmul.f32 %v1230, %v1227
        %v1237 = vmul.f32 %v1230, %v1228
        %v1238 = vmul.f32 %v1230, %v1229
        %v1239 = vmul.f32 %v1231, %v1222
        %v1240 = vmul.f32 %v1232, %v1223
        %v1241 = vmul.f32 %v1233, %v1224
        %v1242 = vmul.f32 %v1234, %v1225
        %v1243 = vmul.f32 %v1235, %v1226
        %v1244 = vmul.f32 %v1236, %v1227
        %v1245 = vmul.f32 %v1237, %v1228
        %v1246 = vmul.f32 %v1238, %v1229
        %v1247 = vmul.f32 %v1239, 1.442695
        %v1248 = vpow.pop %v1247
        %v1249 = vmul.f32 %v1240, 1.442695
        %v1250 = vpow.pop %v1249
        %v1251 = vmul.f32 %v1241, 1.442695
        %v1252 = vpow.pop %v1251
        %v1253 = vmul.f32 %v1242, 1.442695
        %v1254 = vpow.pop %v1253
        %v1255 = vmul.f32 %v1243, 1.442695
        %v1256 = vpow.pop %v1255
        %v1257 = vmul.f32 %v1244, 1.442695
        %v1258 = vpow.pop %v1257
        %v1259 = vmul.f32 %v1245, 1.442695
        %v1260 = vpow.pop %v1259
        %v1261 = vmul.f32 %v1246, 1.442695
        %v1262 = vpow.pop %v1261
        %v1263 = vsel %vm1042, %v1248, 0.0
        %1264 = vadd.xlane.f32.xlu0 %v1263
        %v1265 = vpop.xlane.xlu0 %1264
        %v1266 = vsel %vm1042, %v1250, 0.0
        %1267 = vadd.xlane.f32.xlu0 %v1266
        %v1268 = vpop.xlane.xlu0 %1267
        %v1269 = vsel %vm1042, %v1252, 0.0
        %1270 = vadd.xlane.f32.xlu0 %v1269
        %v1271 = vpop.xlane.xlu0 %1270
        %v1272 = vsel %vm1042, %v1254, 0.0
        %1273 = vadd.xlane.f32.xlu0 %v1272
        %v1274 = vpop.xlane.xlu0 %1273
        %v1275 = vsel %vm1042, %v1256, 0.0
        %1276 = vadd.xlane.f32.xlu0 %v1275
        %v1277 = vpop.xlane.xlu0 %1276
        %v1278 = vsel %vm1042, %v1258, 0.0
        %1279 = vadd.xlane.f32.xlu0 %v1278
        %v1280 = vpop.xlane.xlu0 %1279
        %v1281 = vsel %vm1042, %v1260, 0.0
        %1282 = vadd.xlane.f32.xlu0 %v1281
        %v1283 = vpop.xlane.xlu0 %1282
        %v1284 = vsel %vm1042, %v1262, 0.0
        %1285 = vadd.xlane.f32.xlu0 %v1284
        %v1286 = vpop.xlane.xlu0 %1285
        %s1287 = sld [smem:[#allocation9 + $0x2]]
        %v1288 = vmax.f32 %v1265, 1e-10
        %v1289 = vmax.f32 %v1268, 1e-10
        %v1290 = vmax.f32 %v1271, 1e-10
        %v1291 = vmax.f32 %v1274, 1e-10
        %v1292 = vmax.f32 %v1277, 1e-10
        %v1293 = vmax.f32 %v1280, 1e-10
        %v1294 = vmax.f32 %v1283, 1e-10
        %v1295 = vmax.f32 %v1286, 1e-10
        %v1296 = vlog2.pop %v1288
        %v1297 = vmul.f32 %v1296, 0.6931472
        %v1298 = vlog2.pop %v1289
        %v1299 = vmul.f32 %v1298, 0.6931472
        %v1300 = vlog2.pop %v1290
        %v1301 = vmul.f32 %v1300, 0.6931472
        %v1302 = vlog2.pop %v1291
        %v1303 = vmul.f32 %v1302, 0.6931472
        %v1304 = vlog2.pop %v1292
        %v1305 = vmul.f32 %v1304, 0.6931472
        %v1306 = vlog2.pop %v1293
        %v1307 = vmul.f32 %v1306, 0.6931472
        %v1308 = vlog2.pop %v1294
        %v1309 = vmul.f32 %v1308, 0.6931472
        %v1310 = vlog2.pop %v1295
        %v1311 = vmul.f32 %v1310, 0.6931472
        %v1312 = vstv %s1287
        %v1313 = vmul.f32 %v1312, %v1297
        %v1314 = vmul.f32 %v1312, %v1299
        %v1315 = vmul.f32 %v1312, %v1301
        %v1316 = vmul.f32 %v1312, %v1303
        %v1317 = vmul.f32 %v1312, %v1305
        %v1318 = vmul.f32 %v1312, %v1307
        %v1319 = vmul.f32 %v1312, %v1309
        %v1320 = vmul.f32 %v1312, %v1311
        %v1321 = vadd.f32 %v1211, %v1313
        %v1322 = vadd.f32 %v1212, %v1314
        %v1323 = vadd.f32 %v1213, %v1315
        %v1324 = vadd.f32 %v1214, %v1316
        %v1325 = vadd.f32 %v1215, %v1317
        %v1326 = vadd.f32 %v1216, %v1318
        %v1327 = vadd.f32 %v1217, %v1319
        %v1328 = vadd.f32 %v1218, %v1320
        %s1329 = sld [smem:[#allocation3 + $0x3]]
        %s1330 = sld [smem:[#allocation7 + $0x3]]
        %v1331 = vstv %s1329
        %v1332 = vsub.f32 %v990, %v1331
        %v1333 = vsub.f32 %v991, %v1331
        %v1334 = vsub.f32 %v992, %v1331
        %v1335 = vsub.f32 %v993, %v1331
        %v1336 = vsub.f32 %v994, %v1331
        %v1337 = vsub.f32 %v995, %v1331
        %v1338 = vsub.f32 %v996, %v1331
        %v1339 = vsub.f32 %v997, %v1331
        %v1340 = vstv %s1330
        %v1341 = vmul.f32 %v1340, %v1332
        %v1342 = vmul.f32 %v1340, %v1333
        %v1343 = vmul.f32 %v1340, %v1334
        %v1344 = vmul.f32 %v1340, %v1335
        %v1345 = vmul.f32 %v1340, %v1336
        %v1346 = vmul.f32 %v1340, %v1337
        %v1347 = vmul.f32 %v1340, %v1338
        %v1348 = vmul.f32 %v1340, %v1339
        %v1349 = vmul.f32 %v1341, %v1332
        %v1350 = vmul.f32 %v1342, %v1333
        %v1351 = vmul.f32 %v1343, %v1334
        %v1352 = vmul.f32 %v1344, %v1335
        %v1353 = vmul.f32 %v1345, %v1336
        %v1354 = vmul.f32 %v1346, %v1337
        %v1355 = vmul.f32 %v1347, %v1338
        %v1356 = vmul.f32 %v1348, %v1339
        %v1357 = vmul.f32 %v1349, 1.442695
        %v1358 = vpow.pop %v1357
        %v1359 = vmul.f32 %v1350, 1.442695
        %v1360 = vpow.pop %v1359
        %v1361 = vmul.f32 %v1351, 1.442695
        %v1362 = vpow.pop %v1361
        %v1363 = vmul.f32 %v1352, 1.442695
        %v1364 = vpow.pop %v1363
        %v1365 = vmul.f32 %v1353, 1.442695
        %v1366 = vpow.pop %v1365
        %v1367 = vmul.f32 %v1354, 1.442695
        %v1368 = vpow.pop %v1367
        %v1369 = vmul.f32 %v1355, 1.442695
        %v1370 = vpow.pop %v1369
        %v1371 = vmul.f32 %v1356, 1.442695
        %v1372 = vpow.pop %v1371
        %v1373 = vsel %vm1042, %v1358, 0.0
        %1374 = vadd.xlane.f32.xlu0 %v1373
        %v1375 = vpop.xlane.xlu0 %1374
        %v1376 = vsel %vm1042, %v1360, 0.0
        %1377 = vadd.xlane.f32.xlu0 %v1376
        %v1378 = vpop.xlane.xlu0 %1377
        %v1379 = vsel %vm1042, %v1362, 0.0
        %1380 = vadd.xlane.f32.xlu0 %v1379
        %v1381 = vpop.xlane.xlu0 %1380
        %v1382 = vsel %vm1042, %v1364, 0.0
        %1383 = vadd.xlane.f32.xlu0 %v1382
        %v1384 = vpop.xlane.xlu0 %1383
        %v1385 = vsel %vm1042, %v1366, 0.0
        %1386 = vadd.xlane.f32.xlu0 %v1385
        %v1387 = vpop.xlane.xlu0 %1386
        %v1388 = vsel %vm1042, %v1368, 0.0
        %1389 = vadd.xlane.f32.xlu0 %v1388
        %v1390 = vpop.xlane.xlu0 %1389
        %v1391 = vsel %vm1042, %v1370, 0.0
        %1392 = vadd.xlane.f32.xlu0 %v1391
        %v1393 = vpop.xlane.xlu0 %1392
        %v1394 = vsel %vm1042, %v1372, 0.0
        %1395 = vadd.xlane.f32.xlu0 %v1394
        %v1396 = vpop.xlane.xlu0 %1395
        %s1397 = sld [smem:[#allocation9 + $0x3]]
        %v1398 = vmax.f32 %v1375, 1e-10
        %v1399 = vmax.f32 %v1378, 1e-10
        %v1400 = vmax.f32 %v1381, 1e-10
        %v1401 = vmax.f32 %v1384, 1e-10
        %v1402 = vmax.f32 %v1387, 1e-10
        %v1403 = vmax.f32 %v1390, 1e-10
        %v1404 = vmax.f32 %v1393, 1e-10
        %v1405 = vmax.f32 %v1396, 1e-10
        %v1406 = vlog2.pop %v1398
        %v1407 = vmul.f32 %v1406, 0.6931472
        %v1408 = vlog2.pop %v1399
        %v1409 = vmul.f32 %v1408, 0.6931472
        %v1410 = vlog2.pop %v1400
        %v1411 = vmul.f32 %v1410, 0.6931472
        %v1412 = vlog2.pop %v1401
        %v1413 = vmul.f32 %v1412, 0.6931472
        %v1414 = vlog2.pop %v1402
        %v1415 = vmul.f32 %v1414, 0.6931472
        %v1416 = vlog2.pop %v1403
        %v1417 = vmul.f32 %v1416, 0.6931472
        %v1418 = vlog2.pop %v1404
        %v1419 = vmul.f32 %v1418, 0.6931472
        %v1420 = vlog2.pop %v1405
        %v1421 = vmul.f32 %v1420, 0.6931472
        %v1422 = vstv %s1397
        %v1423 = vmul.f32 %v1422, %v1407
        %v1424 = vmul.f32 %v1422, %v1409
        %v1425 = vmul.f32 %v1422, %v1411
        %v1426 = vmul.f32 %v1422, %v1413
        %v1427 = vmul.f32 %v1422, %v1415
        %v1428 = vmul.f32 %v1422, %v1417
        %v1429 = vmul.f32 %v1422, %v1419
        %v1430 = vmul.f32 %v1422, %v1421
        %v1431 = vadd.f32 %v1321, %v1423
        %v1432 = vadd.f32 %v1322, %v1424
        %v1433 = vadd.f32 %v1323, %v1425
        %v1434 = vadd.f32 %v1324, %v1426
        %v1435 = vadd.f32 %v1325, %v1427
        %v1436 = vadd.f32 %v1326, %v1428
        %v1437 = vadd.f32 %v1327, %v1429
        %v1438 = vadd.f32 %v1328, %v1430
        %s1439 = sld [smem:[#allocation3 + $0x4]]
        %s1440 = sld [smem:[#allocation7 + $0x4]]
        %v1441 = vstv %s1439
        %v1442 = vsub.f32 %v990, %v1441
        %v1443 = vsub.f32 %v991, %v1441
        %v1444 = vsub.f32 %v992, %v1441
        %v1445 = vsub.f32 %v993, %v1441
        %v1446 = vsub.f32 %v994, %v1441
        %v1447 = vsub.f32 %v995, %v1441
        %v1448 = vsub.f32 %v996, %v1441
        %v1449 = vsub.f32 %v997, %v1441
        %v1450 = vstv %s1440
        %v1451 = vmul.f32 %v1450, %v1442
        %v1452 = vmul.f32 %v1450, %v1443
        %v1453 = vmul.f32 %v1450, %v1444
        %v1454 = vmul.f32 %v1450, %v1445
        %v1455 = vmul.f32 %v1450, %v1446
        %v1456 = vmul.f32 %v1450, %v1447
        %v1457 = vmul.f32 %v1450, %v1448
        %v1458 = vmul.f32 %v1450, %v1449
        %v1459 = vmul.f32 %v1451, %v1442
        %v1460 = vmul.f32 %v1452, %v1443
        %v1461 = vmul.f32 %v1453, %v1444
        %v1462 = vmul.f32 %v1454, %v1445
        %v1463 = vmul.f32 %v1455, %v1446
        %v1464 = vmul.f32 %v1456, %v1447
        %v1465 = vmul.f32 %v1457, %v1448
        %v1466 = vmul.f32 %v1458, %v1449
        %v1467 = vmul.f32 %v1459, 1.442695
        %v1468 = vpow.pop %v1467
        %v1469 = vmul.f32 %v1460, 1.442695
        %v1470 = vpow.pop %v1469
        %v1471 = vmul.f32 %v1461, 1.442695
        %v1472 = vpow.pop %v1471
        %v1473 = vmul.f32 %v1462, 1.442695
        %v1474 = vpow.pop %v1473
        %v1475 = vmul.f32 %v1463, 1.442695
        %v1476 = vpow.pop %v1475
        %v1477 = vmul.f32 %v1464, 1.442695
        %v1478 = vpow.pop %v1477
        %v1479 = vmul.f32 %v1465, 1.442695
        %v1480 = vpow.pop %v1479
        %v1481 = vmul.f32 %v1466, 1.442695
        %v1482 = vpow.pop %v1481
        %v1483 = vsel %vm1042, %v1468, 0.0
        %1484 = vadd.xlane.f32.xlu0 %v1483
        %v1485 = vpop.xlane.xlu0 %1484
        %v1486 = vsel %vm1042, %v1470, 0.0
        %1487 = vadd.xlane.f32.xlu0 %v1486
        %v1488 = vpop.xlane.xlu0 %1487
        %v1489 = vsel %vm1042, %v1472, 0.0
        %1490 = vadd.xlane.f32.xlu0 %v1489
        %v1491 = vpop.xlane.xlu0 %1490
        %v1492 = vsel %vm1042, %v1474, 0.0
        %1493 = vadd.xlane.f32.xlu0 %v1492
        %v1494 = vpop.xlane.xlu0 %1493
        %v1495 = vsel %vm1042, %v1476, 0.0
        %1496 = vadd.xlane.f32.xlu0 %v1495
        %v1497 = vpop.xlane.xlu0 %1496
        %v1498 = vsel %vm1042, %v1478, 0.0
        %1499 = vadd.xlane.f32.xlu0 %v1498
        %v1500 = vpop.xlane.xlu0 %1499
        %v1501 = vsel %vm1042, %v1480, 0.0
        %1502 = vadd.xlane.f32.xlu0 %v1501
        %v1503 = vpop.xlane.xlu0 %1502
        %v1504 = vsel %vm1042, %v1482, 0.0
        %1505 = vadd.xlane.f32.xlu0 %v1504
        %v1506 = vpop.xlane.xlu0 %1505
        %s1507 = sld [smem:[#allocation9 + $0x4]]
        %v1508 = vmax.f32 %v1485, 1e-10
        %v1509 = vmax.f32 %v1488, 1e-10
        %v1510 = vmax.f32 %v1491, 1e-10
        %v1511 = vmax.f32 %v1494, 1e-10
        %v1512 = vmax.f32 %v1497, 1e-10
        %v1513 = vmax.f32 %v1500, 1e-10
        %v1514 = vmax.f32 %v1503, 1e-10
        %v1515 = vmax.f32 %v1506, 1e-10
        %v1516 = vlog2.pop %v1508
        %v1517 = vmul.f32 %v1516, 0.6931472
        %v1518 = vlog2.pop %v1509
        %v1519 = vmul.f32 %v1518, 0.6931472
        %v1520 = vlog2.pop %v1510
        %v1521 = vmul.f32 %v1520, 0.6931472
        %v1522 = vlog2.pop %v1511
        %v1523 = vmul.f32 %v1522, 0.6931472
        %v1524 = vlog2.pop %v1512
        %v1525 = vmul.f32 %v1524, 0.6931472
        %v1526 = vlog2.pop %v1513
        %v1527 = vmul.f32 %v1526, 0.6931472
        %v1528 = vlog2.pop %v1514
        %v1529 = vmul.f32 %v1528, 0.6931472
        %v1530 = vlog2.pop %v1515
        %v1531 = vmul.f32 %v1530, 0.6931472
        %v1532 = vstv %s1507
        %v1533 = vmul.f32 %v1532, %v1517
        %v1534 = vmul.f32 %v1532, %v1519
        %v1535 = vmul.f32 %v1532, %v1521
        %v1536 = vmul.f32 %v1532, %v1523
        %v1537 = vmul.f32 %v1532, %v1525
        %v1538 = vmul.f32 %v1532, %v1527
        %v1539 = vmul.f32 %v1532, %v1529
        %v1540 = vmul.f32 %v1532, %v1531
        %v1541 = vadd.f32 %v1431, %v1533
        %v1542 = vadd.f32 %v1432, %v1534
        %v1543 = vadd.f32 %v1433, %v1535
        %v1544 = vadd.f32 %v1434, %v1536
        %v1545 = vadd.f32 %v1435, %v1537
        %v1546 = vadd.f32 %v1436, %v1538
        %v1547 = vadd.f32 %v1437, %v1539
        %v1548 = vadd.f32 %v1438, %v1540
        %s1549 = sld [smem:[#allocation3 + $0x5]]
        %s1550 = sld [smem:[#allocation7 + $0x5]]
        %v1551 = vstv %s1549
        %v1552 = vsub.f32 %v990, %v1551
        %v1553 = vsub.f32 %v991, %v1551
        %v1554 = vsub.f32 %v992, %v1551
        %v1555 = vsub.f32 %v993, %v1551
        %v1556 = vsub.f32 %v994, %v1551
        %v1557 = vsub.f32 %v995, %v1551
        %v1558 = vsub.f32 %v996, %v1551
        %v1559 = vsub.f32 %v997, %v1551
        %v1560 = vstv %s1550
        %v1561 = vmul.f32 %v1560, %v1552
        %v1562 = vmul.f32 %v1560, %v1553
        %v1563 = vmul.f32 %v1560, %v1554
        %v1564 = vmul.f32 %v1560, %v1555
        %v1565 = vmul.f32 %v1560, %v1556
        %v1566 = vmul.f32 %v1560, %v1557
        %v1567 = vmul.f32 %v1560, %v1558
        %v1568 = vmul.f32 %v1560, %v1559
        %v1569 = vmul.f32 %v1561, %v1552
        %v1570 = vmul.f32 %v1562, %v1553
        %v1571 = vmul.f32 %v1563, %v1554
        %v1572 = vmul.f32 %v1564, %v1555
        %v1573 = vmul.f32 %v1565, %v1556
        %v1574 = vmul.f32 %v1566, %v1557
        %v1575 = vmul.f32 %v1567, %v1558
        %v1576 = vmul.f32 %v1568, %v1559
        %v1577 = vmul.f32 %v1569, 1.442695
        %v1578 = vpow.pop %v1577
        %v1579 = vmul.f32 %v1570, 1.442695
        %v1580 = vpow.pop %v1579
        %v1581 = vmul.f32 %v1571, 1.442695
        %v1582 = vpow.pop %v1581
        %v1583 = vmul.f32 %v1572, 1.442695
        %v1584 = vpow.pop %v1583
        %v1585 = vmul.f32 %v1573, 1.442695
        %v1586 = vpow.pop %v1585
        %v1587 = vmul.f32 %v1574, 1.442695
        %v1588 = vpow.pop %v1587
        %v1589 = vmul.f32 %v1575, 1.442695
        %v1590 = vpow.pop %v1589
        %v1591 = vmul.f32 %v1576, 1.442695
        %v1592 = vpow.pop %v1591
        %v1593 = vsel %vm1042, %v1578, 0.0
        %1594 = vadd.xlane.f32.xlu0 %v1593
        %v1595 = vpop.xlane.xlu0 %1594
        %v1596 = vsel %vm1042, %v1580, 0.0
        %1597 = vadd.xlane.f32.xlu0 %v1596
        %v1598 = vpop.xlane.xlu0 %1597
        %v1599 = vsel %vm1042, %v1582, 0.0
        %1600 = vadd.xlane.f32.xlu0 %v1599
        %v1601 = vpop.xlane.xlu0 %1600
        %v1602 = vsel %vm1042, %v1584, 0.0
        %1603 = vadd.xlane.f32.xlu0 %v1602
        %v1604 = vpop.xlane.xlu0 %1603
        %v1605 = vsel %vm1042, %v1586, 0.0
        %1606 = vadd.xlane.f32.xlu0 %v1605
        %v1607 = vpop.xlane.xlu0 %1606
        %v1608 = vsel %vm1042, %v1588, 0.0
        %1609 = vadd.xlane.f32.xlu0 %v1608
        %v1610 = vpop.xlane.xlu0 %1609
        %v1611 = vsel %vm1042, %v1590, 0.0
        %1612 = vadd.xlane.f32.xlu0 %v1611
        %v1613 = vpop.xlane.xlu0 %1612
        %v1614 = vsel %vm1042, %v1592, 0.0
        %1615 = vadd.xlane.f32.xlu0 %v1614
        %v1616 = vpop.xlane.xlu0 %1615
        %s1617 = sld [smem:[#allocation9 + $0x5]]
        %v1618 = vmax.f32 %v1595, 1e-10
        %v1619 = vmax.f32 %v1598, 1e-10
        %v1620 = vmax.f32 %v1601, 1e-10
        %v1621 = vmax.f32 %v1604, 1e-10
        %v1622 = vmax.f32 %v1607, 1e-10
        %v1623 = vmax.f32 %v1610, 1e-10
        %v1624 = vmax.f32 %v1613, 1e-10
        %v1625 = vmax.f32 %v1616, 1e-10
        %v1626 = vlog2.pop %v1618
        %v1627 = vmul.f32 %v1626, 0.6931472
        %v1628 = vlog2.pop %v1619
        %v1629 = vmul.f32 %v1628, 0.6931472
        %v1630 = vlog2.pop %v1620
        %v1631 = vmul.f32 %v1630, 0.6931472
        %v1632 = vlog2.pop %v1621
        %v1633 = vmul.f32 %v1632, 0.6931472
        %v1634 = vlog2.pop %v1622
        %v1635 = vmul.f32 %v1634, 0.6931472
        %v1636 = vlog2.pop %v1623
        %v1637 = vmul.f32 %v1636, 0.6931472
        %v1638 = vlog2.pop %v1624
        %v1639 = vmul.f32 %v1638, 0.6931472
        %v1640 = vlog2.pop %v1625
        %v1641 = vmul.f32 %v1640, 0.6931472
        %v1642 = vstv %s1617
        %v1643 = vmul.f32 %v1642, %v1627
        %v1644 = vmul.f32 %v1642, %v1629
        %v1645 = vmul.f32 %v1642, %v1631
        %v1646 = vmul.f32 %v1642, %v1633
        %v1647 = vmul.f32 %v1642, %v1635
        %v1648 = vmul.f32 %v1642, %v1637
        %v1649 = vmul.f32 %v1642, %v1639
        %v1650 = vmul.f32 %v1642, %v1641
        %v1651 = vadd.f32 %v1541, %v1643
        %v1652 = vadd.f32 %v1542, %v1644
        %v1653 = vadd.f32 %v1543, %v1645
        %v1654 = vadd.f32 %v1544, %v1646
        %v1655 = vadd.f32 %v1545, %v1647
        %v1656 = vadd.f32 %v1546, %v1648
        %v1657 = vadd.f32 %v1547, %v1649
        %v1658 = vadd.f32 %v1548, %v1650
        %s1659 = sld [smem:[#allocation3 + $0x6]]
        %s1660 = sld [smem:[#allocation7 + $0x6]]
        %v1661 = vstv %s1659
        %v1662 = vsub.f32 %v990, %v1661
        %v1663 = vsub.f32 %v991, %v1661
        %v1664 = vsub.f32 %v992, %v1661
        %v1665 = vsub.f32 %v993, %v1661
        %v1666 = vsub.f32 %v994, %v1661
        %v1667 = vsub.f32 %v995, %v1661
        %v1668 = vsub.f32 %v996, %v1661
        %v1669 = vsub.f32 %v997, %v1661
        %v1670 = vstv %s1660
        %v1671 = vmul.f32 %v1670, %v1662
        %v1672 = vmul.f32 %v1670, %v1663
        %v1673 = vmul.f32 %v1670, %v1664
        %v1674 = vmul.f32 %v1670, %v1665
        %v1675 = vmul.f32 %v1670, %v1666
        %v1676 = vmul.f32 %v1670, %v1667
        %v1677 = vmul.f32 %v1670, %v1668
        %v1678 = vmul.f32 %v1670, %v1669
        %v1679 = vmul.f32 %v1671, %v1662
        %v1680 = vmul.f32 %v1672, %v1663
        %v1681 = vmul.f32 %v1673, %v1664
        %v1682 = vmul.f32 %v1674, %v1665
        %v1683 = vmul.f32 %v1675, %v1666
        %v1684 = vmul.f32 %v1676, %v1667
        %v1685 = vmul.f32 %v1677, %v1668
        %v1686 = vmul.f32 %v1678, %v1669
        %v1687 = vmul.f32 %v1679, 1.442695
        %v1688 = vpow.pop %v1687
        %v1689 = vmul.f32 %v1680, 1.442695
        %v1690 = vpow.pop %v1689
        %v1691 = vmul.f32 %v1681, 1.442695
        %v1692 = vpow.pop %v1691
        %v1693 = vmul.f32 %v1682, 1.442695
        %v1694 = vpow.pop %v1693
        %v1695 = vmul.f32 %v1683, 1.442695
        %v1696 = vpow.pop %v1695
        %v1697 = vmul.f32 %v1684, 1.442695
        %v1698 = vpow.pop %v1697
        %v1699 = vmul.f32 %v1685, 1.442695
        %v1700 = vpow.pop %v1699
        %v1701 = vmul.f32 %v1686, 1.442695
        %v1702 = vpow.pop %v1701
        %v1703 = vsel %vm1042, %v1688, 0.0
        %1704 = vadd.xlane.f32.xlu0 %v1703
        %v1705 = vpop.xlane.xlu0 %1704
        %v1706 = vsel %vm1042, %v1690, 0.0
        %1707 = vadd.xlane.f32.xlu0 %v1706
        %v1708 = vpop.xlane.xlu0 %1707
        %v1709 = vsel %vm1042, %v1692, 0.0
        %1710 = vadd.xlane.f32.xlu0 %v1709
        %v1711 = vpop.xlane.xlu0 %1710
        %v1712 = vsel %vm1042, %v1694, 0.0
        %1713 = vadd.xlane.f32.xlu0 %v1712
        %v1714 = vpop.xlane.xlu0 %1713
        %v1715 = vsel %vm1042, %v1696, 0.0
        %1716 = vadd.xlane.f32.xlu0 %v1715
        %v1717 = vpop.xlane.xlu0 %1716
        %v1718 = vsel %vm1042, %v1698, 0.0
        %1719 = vadd.xlane.f32.xlu0 %v1718
        %v1720 = vpop.xlane.xlu0 %1719
        %v1721 = vsel %vm1042, %v1700, 0.0
        %1722 = vadd.xlane.f32.xlu0 %v1721
        %v1723 = vpop.xlane.xlu0 %1722
        %v1724 = vsel %vm1042, %v1702, 0.0
        %1725 = vadd.xlane.f32.xlu0 %v1724
        %v1726 = vpop.xlane.xlu0 %1725
        %s1727 = sld [smem:[#allocation9 + $0x6]]
        %v1728 = vmax.f32 %v1705, 1e-10
        %v1729 = vmax.f32 %v1708, 1e-10
        %v1730 = vmax.f32 %v1711, 1e-10
        %v1731 = vmax.f32 %v1714, 1e-10
        %v1732 = vmax.f32 %v1717, 1e-10
        %v1733 = vmax.f32 %v1720, 1e-10
        %v1734 = vmax.f32 %v1723, 1e-10
        %v1735 = vmax.f32 %v1726, 1e-10
        %v1736 = vlog2.pop %v1728
        %v1737 = vmul.f32 %v1736, 0.6931472
        %v1738 = vlog2.pop %v1729
        %v1739 = vmul.f32 %v1738, 0.6931472
        %v1740 = vlog2.pop %v1730
        %v1741 = vmul.f32 %v1740, 0.6931472
        %v1742 = vlog2.pop %v1731
        %v1743 = vmul.f32 %v1742, 0.6931472
        %v1744 = vlog2.pop %v1732
        %v1745 = vmul.f32 %v1744, 0.6931472
        %v1746 = vlog2.pop %v1733
        %v1747 = vmul.f32 %v1746, 0.6931472
        %v1748 = vlog2.pop %v1734
        %v1749 = vmul.f32 %v1748, 0.6931472
        %v1750 = vlog2.pop %v1735
        %v1751 = vmul.f32 %v1750, 0.6931472
        %v1752 = vstv %s1727
        %v1753 = vmul.f32 %v1752, %v1737
        %v1754 = vmul.f32 %v1752, %v1739
        %v1755 = vmul.f32 %v1752, %v1741
        %v1756 = vmul.f32 %v1752, %v1743
        %v1757 = vmul.f32 %v1752, %v1745
        %v1758 = vmul.f32 %v1752, %v1747
        %v1759 = vmul.f32 %v1752, %v1749
        %v1760 = vmul.f32 %v1752, %v1751
        %v1761 = vadd.f32 %v1651, %v1753
        %v1762 = vadd.f32 %v1652, %v1754
        %v1763 = vadd.f32 %v1653, %v1755
        %v1764 = vadd.f32 %v1654, %v1756
        %v1765 = vadd.f32 %v1655, %v1757
        %v1766 = vadd.f32 %v1656, %v1758
        %v1767 = vadd.f32 %v1657, %v1759
        %v1768 = vadd.f32 %v1658, %v1760
        %s1769 = sld [smem:[#allocation3 + $0x7]]
        %s1770 = sld [smem:[#allocation7 + $0x7]]
        %v1771 = vstv %s1769
        %v1772 = vsub.f32 %v990, %v1771
        %v1773 = vsub.f32 %v991, %v1771
        %v1774 = vsub.f32 %v992, %v1771
        %v1775 = vsub.f32 %v993, %v1771
        %v1776 = vsub.f32 %v994, %v1771
        %v1777 = vsub.f32 %v995, %v1771
        %v1778 = vsub.f32 %v996, %v1771
        %v1779 = vsub.f32 %v997, %v1771
        %v1780 = vstv %s1770
        %v1781 = vmul.f32 %v1780, %v1772
        %v1782 = vmul.f32 %v1780, %v1773
        %v1783 = vmul.f32 %v1780, %v1774
        %v1784 = vmul.f32 %v1780, %v1775
        %v1785 = vmul.f32 %v1780, %v1776
        %v1786 = vmul.f32 %v1780, %v1777
        %v1787 = vmul.f32 %v1780, %v1778
        %v1788 = vmul.f32 %v1780, %v1779
        %v1789 = vmul.f32 %v1781, %v1772
        %v1790 = vmul.f32 %v1782, %v1773
        %v1791 = vmul.f32 %v1783, %v1774
        %v1792 = vmul.f32 %v1784, %v1775
        %v1793 = vmul.f32 %v1785, %v1776
        %v1794 = vmul.f32 %v1786, %v1777
        %v1795 = vmul.f32 %v1787, %v1778
        %v1796 = vmul.f32 %v1788, %v1779
        %v1797 = vmul.f32 %v1789, 1.442695
        %v1798 = vpow.pop %v1797
        %v1799 = vmul.f32 %v1790, 1.442695
        %v1800 = vpow.pop %v1799
        %v1801 = vmul.f32 %v1791, 1.442695
        %v1802 = vpow.pop %v1801
        %v1803 = vmul.f32 %v1792, 1.442695
        %v1804 = vpow.pop %v1803
        %v1805 = vmul.f32 %v1793, 1.442695
        %v1806 = vpow.pop %v1805
        %v1807 = vmul.f32 %v1794, 1.442695
        %v1808 = vpow.pop %v1807
        %v1809 = vmul.f32 %v1795, 1.442695
        %v1810 = vpow.pop %v1809
        %v1811 = vmul.f32 %v1796, 1.442695
        %v1812 = vpow.pop %v1811
        %v1813 = vsel %vm1042, %v1798, 0.0
        %1814 = vadd.xlane.f32.xlu0 %v1813
        %v1815 = vpop.xlane.xlu0 %1814
        %v1816 = vsel %vm1042, %v1800, 0.0
        %1817 = vadd.xlane.f32.xlu0 %v1816
        %v1818 = vpop.xlane.xlu0 %1817
        %v1819 = vsel %vm1042, %v1802, 0.0
        %1820 = vadd.xlane.f32.xlu0 %v1819
        %v1821 = vpop.xlane.xlu0 %1820
        %v1822 = vsel %vm1042, %v1804, 0.0
        %1823 = vadd.xlane.f32.xlu0 %v1822
        %v1824 = vpop.xlane.xlu0 %1823
        %v1825 = vsel %vm1042, %v1806, 0.0
        %1826 = vadd.xlane.f32.xlu0 %v1825
        %v1827 = vpop.xlane.xlu0 %1826
        %v1828 = vsel %vm1042, %v1808, 0.0
        %1829 = vadd.xlane.f32.xlu0 %v1828
        %v1830 = vpop.xlane.xlu0 %1829
        %v1831 = vsel %vm1042, %v1810, 0.0
        %1832 = vadd.xlane.f32.xlu0 %v1831
        %v1833 = vpop.xlane.xlu0 %1832
        %v1834 = vsel %vm1042, %v1812, 0.0
        %1835 = vadd.xlane.f32.xlu0 %v1834
        %v1836 = vpop.xlane.xlu0 %1835
        %s1837 = sld [smem:[#allocation9 + $0x7]]
        %v1838 = vmax.f32 %v1815, 1e-10
        %v1839 = vmax.f32 %v1818, 1e-10
        %v1840 = vmax.f32 %v1821, 1e-10
        %v1841 = vmax.f32 %v1824, 1e-10
        %v1842 = vmax.f32 %v1827, 1e-10
        %v1843 = vmax.f32 %v1830, 1e-10
        %v1844 = vmax.f32 %v1833, 1e-10
        %v1845 = vmax.f32 %v1836, 1e-10
        %v1846 = vlog2.pop %v1838
        %v1847 = vmul.f32 %v1846, 0.6931472
        %v1848 = vlog2.pop %v1839
        %v1849 = vmul.f32 %v1848, 0.6931472
        %v1850 = vlog2.pop %v1840
        %v1851 = vmul.f32 %v1850, 0.6931472
        %v1852 = vlog2.pop %v1841
        %v1853 = vmul.f32 %v1852, 0.6931472
        %v1854 = vlog2.pop %v1842
        %v1855 = vmul.f32 %v1854, 0.6931472
        %v1856 = vlog2.pop %v1843
        %v1857 = vmul.f32 %v1856, 0.6931472
        %v1858 = vlog2.pop %v1844
        %v1859 = vmul.f32 %v1858, 0.6931472
        %v1860 = vlog2.pop %v1845
        %v1861 = vmul.f32 %v1860, 0.6931472
        %v1862 = vstv %s1837
        %v1863 = vmul.f32 %v1862, %v1847
        %v1864 = vmul.f32 %v1862, %v1849
        %v1865 = vmul.f32 %v1862, %v1851
        %v1866 = vmul.f32 %v1862, %v1853
        %v1867 = vmul.f32 %v1862, %v1855
        %v1868 = vmul.f32 %v1862, %v1857
        %v1869 = vmul.f32 %v1862, %v1859
        %v1870 = vmul.f32 %v1862, %v1861
        %v1871 = vadd.f32 %v1761, %v1863
        %v1872 = vadd.f32 %v1762, %v1864
        %v1873 = vadd.f32 %v1763, %v1865
        %v1874 = vadd.f32 %v1764, %v1866
        %v1875 = vadd.f32 %v1765, %v1867
        %v1876 = vadd.f32 %v1766, %v1868
        %v1877 = vadd.f32 %v1767, %v1869
        %v1878 = vadd.f32 %v1768, %v1870
        %s1879 = sld [smem:[#allocation3 + $0x8]]
        %s1880 = sld [smem:[#allocation7 + $0x8]]
        %v1881 = vstv %s1879
        %v1882 = vsub.f32 %v990, %v1881
        %v1883 = vsub.f32 %v991, %v1881
        %v1884 = vsub.f32 %v992, %v1881
        %v1885 = vsub.f32 %v993, %v1881
        %v1886 = vsub.f32 %v994, %v1881
        %v1887 = vsub.f32 %v995, %v1881
        %v1888 = vsub.f32 %v996, %v1881
        %v1889 = vsub.f32 %v997, %v1881
        %v1890 = vstv %s1880
        %v1891 = vmul.f32 %v1890, %v1882
        %v1892 = vmul.f32 %v1890, %v1883
        %v1893 = vmul.f32 %v1890, %v1884
        %v1894 = vmul.f32 %v1890, %v1885
        %v1895 = vmul.f32 %v1890, %v1886
        %v1896 = vmul.f32 %v1890, %v1887
        %v1897 = vmul.f32 %v1890, %v1888
        %v1898 = vmul.f32 %v1890, %v1889
        %v1899 = vmul.f32 %v1891, %v1882
        %v1900 = vmul.f32 %v1892, %v1883
        %v1901 = vmul.f32 %v1893, %v1884
        %v1902 = vmul.f32 %v1894, %v1885
        %v1903 = vmul.f32 %v1895, %v1886
        %v1904 = vmul.f32 %v1896, %v1887
        %v1905 = vmul.f32 %v1897, %v1888
        %v1906 = vmul.f32 %v1898, %v1889
        %v1907 = vmul.f32 %v1899, 1.442695
        %v1908 = vpow.pop %v1907
        %v1909 = vmul.f32 %v1900, 1.442695
        %v1910 = vpow.pop %v1909
        %v1911 = vmul.f32 %v1901, 1.442695
        %v1912 = vpow.pop %v1911
        %v1913 = vmul.f32 %v1902, 1.442695
        %v1914 = vpow.pop %v1913
        %v1915 = vmul.f32 %v1903, 1.442695
        %v1916 = vpow.pop %v1915
        %v1917 = vmul.f32 %v1904, 1.442695
        %v1918 = vpow.pop %v1917
        %v1919 = vmul.f32 %v1905, 1.442695
        %v1920 = vpow.pop %v1919
        %v1921 = vmul.f32 %v1906, 1.442695
        %v1922 = vpow.pop %v1921
        %v1923 = vsel %vm1042, %v1908, 0.0
        %1924 = vadd.xlane.f32.xlu0 %v1923
        %v1925 = vpop.xlane.xlu0 %1924
        %v1926 = vsel %vm1042, %v1910, 0.0
        %1927 = vadd.xlane.f32.xlu0 %v1926
        %v1928 = vpop.xlane.xlu0 %1927
        %v1929 = vsel %vm1042, %v1912, 0.0
        %1930 = vadd.xlane.f32.xlu0 %v1929
        %v1931 = vpop.xlane.xlu0 %1930
        %v1932 = vsel %vm1042, %v1914, 0.0
        %1933 = vadd.xlane.f32.xlu0 %v1932
        %v1934 = vpop.xlane.xlu0 %1933
        %v1935 = vsel %vm1042, %v1916, 0.0
        %1936 = vadd.xlane.f32.xlu0 %v1935
        %v1937 = vpop.xlane.xlu0 %1936
        %v1938 = vsel %vm1042, %v1918, 0.0
        %1939 = vadd.xlane.f32.xlu0 %v1938
        %v1940 = vpop.xlane.xlu0 %1939
        %v1941 = vsel %vm1042, %v1920, 0.0
        %1942 = vadd.xlane.f32.xlu0 %v1941
        %v1943 = vpop.xlane.xlu0 %1942
        %v1944 = vsel %vm1042, %v1922, 0.0
        %1945 = vadd.xlane.f32.xlu0 %v1944
        %v1946 = vpop.xlane.xlu0 %1945
        %s1947 = sld [smem:[#allocation9 + $0x8]]
        %v1948 = vmax.f32 %v1925, 1e-10
        %v1949 = vmax.f32 %v1928, 1e-10
        %v1950 = vmax.f32 %v1931, 1e-10
        %v1951 = vmax.f32 %v1934, 1e-10
        %v1952 = vmax.f32 %v1937, 1e-10
        %v1953 = vmax.f32 %v1940, 1e-10
        %v1954 = vmax.f32 %v1943, 1e-10
        %v1955 = vmax.f32 %v1946, 1e-10
        %v1956 = vlog2.pop %v1948
        %v1957 = vmul.f32 %v1956, 0.6931472
        %v1958 = vlog2.pop %v1949
        %v1959 = vmul.f32 %v1958, 0.6931472
        %v1960 = vlog2.pop %v1950
        %v1961 = vmul.f32 %v1960, 0.6931472
        %v1962 = vlog2.pop %v1951
        %v1963 = vmul.f32 %v1962, 0.6931472
        %v1964 = vlog2.pop %v1952
        %v1965 = vmul.f32 %v1964, 0.6931472
        %v1966 = vlog2.pop %v1953
        %v1967 = vmul.f32 %v1966, 0.6931472
        %v1968 = vlog2.pop %v1954
        %v1969 = vmul.f32 %v1968, 0.6931472
        %v1970 = vlog2.pop %v1955
        %v1971 = vmul.f32 %v1970, 0.6931472
        %v1972 = vstv %s1947
        %v1973 = vmul.f32 %v1972, %v1957
        %v1974 = vmul.f32 %v1972, %v1959
        %v1975 = vmul.f32 %v1972, %v1961
        %v1976 = vmul.f32 %v1972, %v1963
        %v1977 = vmul.f32 %v1972, %v1965
        %v1978 = vmul.f32 %v1972, %v1967
        %v1979 = vmul.f32 %v1972, %v1969
        %v1980 = vmul.f32 %v1972, %v1971
        %v1981 = vadd.f32 %v1871, %v1973
        %v1982 = vadd.f32 %v1872, %v1974
        %v1983 = vadd.f32 %v1873, %v1975
        %v1984 = vadd.f32 %v1874, %v1976
        %v1985 = vadd.f32 %v1875, %v1977
        %v1986 = vadd.f32 %v1876, %v1978
        %v1987 = vadd.f32 %v1877, %v1979
        %v1988 = vadd.f32 %v1878, %v1980
        %s1989 = sld [smem:[#allocation3 + $0x9]]
        %s1990 = sld [smem:[#allocation7 + $0x9]]
        %v1991 = vstv %s1989
        %v1992 = vsub.f32 %v990, %v1991
        %v1993 = vsub.f32 %v991, %v1991
        %v1994 = vsub.f32 %v992, %v1991
        %v1995 = vsub.f32 %v993, %v1991
        %v1996 = vsub.f32 %v994, %v1991
        %v1997 = vsub.f32 %v995, %v1991
        %v1998 = vsub.f32 %v996, %v1991
        %v1999 = vsub.f32 %v997, %v1991
        %v2000 = vstv %s1990
        %v2001 = vmul.f32 %v2000, %v1992
        %v2002 = vmul.f32 %v2000, %v1993
        %v2003 = vmul.f32 %v2000, %v1994
        %v2004 = vmul.f32 %v2000, %v1995
        %v2005 = vmul.f32 %v2000, %v1996
        %v2006 = vmul.f32 %v2000, %v1997
        %v2007 = vmul.f32 %v2000, %v1998
        %v2008 = vmul.f32 %v2000, %v1999
        %v2009 = vmul.f32 %v2001, %v1992
        %v2010 = vmul.f32 %v2002, %v1993
        %v2011 = vmul.f32 %v2003, %v1994
        %v2012 = vmul.f32 %v2004, %v1995
        %v2013 = vmul.f32 %v2005, %v1996
        %v2014 = vmul.f32 %v2006, %v1997
        %v2015 = vmul.f32 %v2007, %v1998
        %v2016 = vmul.f32 %v2008, %v1999
        %v2017 = vmul.f32 %v2009, 1.442695
        %v2018 = vpow.pop %v2017
        %v2019 = vmul.f32 %v2010, 1.442695
        %v2020 = vpow.pop %v2019
        %v2021 = vmul.f32 %v2011, 1.442695
        %v2022 = vpow.pop %v2021
        %v2023 = vmul.f32 %v2012, 1.442695
        %v2024 = vpow.pop %v2023
        %v2025 = vmul.f32 %v2013, 1.442695
        %v2026 = vpow.pop %v2025
        %v2027 = vmul.f32 %v2014, 1.442695
        %v2028 = vpow.pop %v2027
        %v2029 = vmul.f32 %v2015, 1.442695
        %v2030 = vpow.pop %v2029
        %v2031 = vmul.f32 %v2016, 1.442695
        %v2032 = vpow.pop %v2031
        %v2033 = vsel %vm1042, %v2018, 0.0
        %2034 = vadd.xlane.f32.xlu0 %v2033
        %v2035 = vpop.xlane.xlu0 %2034
        %v2036 = vsel %vm1042, %v2020, 0.0
        %2037 = vadd.xlane.f32.xlu0 %v2036
        %v2038 = vpop.xlane.xlu0 %2037
        %v2039 = vsel %vm1042, %v2022, 0.0
        %2040 = vadd.xlane.f32.xlu0 %v2039
        %v2041 = vpop.xlane.xlu0 %2040
        %v2042 = vsel %vm1042, %v2024, 0.0
        %2043 = vadd.xlane.f32.xlu0 %v2042
        %v2044 = vpop.xlane.xlu0 %2043
        %v2045 = vsel %vm1042, %v2026, 0.0
        %2046 = vadd.xlane.f32.xlu0 %v2045
        %v2047 = vpop.xlane.xlu0 %2046
        %v2048 = vsel %vm1042, %v2028, 0.0
        %2049 = vadd.xlane.f32.xlu0 %v2048
        %v2050 = vpop.xlane.xlu0 %2049
        %v2051 = vsel %vm1042, %v2030, 0.0
        %2052 = vadd.xlane.f32.xlu0 %v2051
        %v2053 = vpop.xlane.xlu0 %2052
        %v2054 = vsel %vm1042, %v2032, 0.0
        %2055 = vadd.xlane.f32.xlu0 %v2054
        %v2056 = vpop.xlane.xlu0 %2055
        %s2057 = sld [smem:[#allocation9 + $0x9]]
        %v2058 = vmax.f32 %v2035, 1e-10
        %v2059 = vmax.f32 %v2038, 1e-10
        %v2060 = vmax.f32 %v2041, 1e-10
        %v2061 = vmax.f32 %v2044, 1e-10
        %v2062 = vmax.f32 %v2047, 1e-10
        %v2063 = vmax.f32 %v2050, 1e-10
        %v2064 = vmax.f32 %v2053, 1e-10
        %v2065 = vmax.f32 %v2056, 1e-10
        %v2066 = vlog2.pop %v2058
        %v2067 = vmul.f32 %v2066, 0.6931472
        %v2068 = vlog2.pop %v2059
        %v2069 = vmul.f32 %v2068, 0.6931472
        %v2070 = vlog2.pop %v2060
        %v2071 = vmul.f32 %v2070, 0.6931472
        %v2072 = vlog2.pop %v2061
        %v2073 = vmul.f32 %v2072, 0.6931472
        %v2074 = vlog2.pop %v2062
        %v2075 = vmul.f32 %v2074, 0.6931472
        %v2076 = vlog2.pop %v2063
        %v2077 = vmul.f32 %v2076, 0.6931472
        %v2078 = vlog2.pop %v2064
        %v2079 = vmul.f32 %v2078, 0.6931472
        %v2080 = vlog2.pop %v2065
        %v2081 = vmul.f32 %v2080, 0.6931472
        %v2082 = vstv %s2057
        %v2083 = vmul.f32 %v2082, %v2067
        %v2084 = vmul.f32 %v2082, %v2069
        %v2085 = vmul.f32 %v2082, %v2071
        %v2086 = vmul.f32 %v2082, %v2073
        %v2087 = vmul.f32 %v2082, %v2075
        %v2088 = vmul.f32 %v2082, %v2077
        %v2089 = vmul.f32 %v2082, %v2079
        %v2090 = vmul.f32 %v2082, %v2081
        %v2091 = vadd.f32 %v1981, %v2083
        %v2092 = vadd.f32 %v1982, %v2084
        %v2093 = vadd.f32 %v1983, %v2085
        %v2094 = vadd.f32 %v1984, %v2086
        %v2095 = vadd.f32 %v1985, %v2087
        %v2096 = vadd.f32 %v1986, %v2088
        %v2097 = vadd.f32 %v1987, %v2089
        %v2098 = vadd.f32 %v1988, %v2090
        %s2099 = sld [smem:[#allocation3 + $0xa]]
        %s2100 = sld [smem:[#allocation7 + $0xa]]
        %v2101 = vstv %s2099
        %v2102 = vsub.f32 %v990, %v2101
        %v2103 = vsub.f32 %v991, %v2101
        %v2104 = vsub.f32 %v992, %v2101
        %v2105 = vsub.f32 %v993, %v2101
        %v2106 = vsub.f32 %v994, %v2101
        %v2107 = vsub.f32 %v995, %v2101
        %v2108 = vsub.f32 %v996, %v2101
        %v2109 = vsub.f32 %v997, %v2101
        %v2110 = vstv %s2100
        %v2111 = vmul.f32 %v2110, %v2102
        %v2112 = vmul.f32 %v2110, %v2103
        %v2113 = vmul.f32 %v2110, %v2104
        %v2114 = vmul.f32 %v2110, %v2105
        %v2115 = vmul.f32 %v2110, %v2106
        %v2116 = vmul.f32 %v2110, %v2107
        %v2117 = vmul.f32 %v2110, %v2108
        %v2118 = vmul.f32 %v2110, %v2109
        %v2119 = vmul.f32 %v2111, %v2102
        %v2120 = vmul.f32 %v2112, %v2103
        %v2121 = vmul.f32 %v2113, %v2104
        %v2122 = vmul.f32 %v2114, %v2105
        %v2123 = vmul.f32 %v2115, %v2106
        %v2124 = vmul.f32 %v2116, %v2107
        %v2125 = vmul.f32 %v2117, %v2108
        %v2126 = vmul.f32 %v2118, %v2109
        %v2127 = vmul.f32 %v2119, 1.442695
        %v2128 = vpow.pop %v2127
        %v2129 = vmul.f32 %v2120, 1.442695
        %v2130 = vpow.pop %v2129
        %v2131 = vmul.f32 %v2121, 1.442695
        %v2132 = vpow.pop %v2131
        %v2133 = vmul.f32 %v2122, 1.442695
        %v2134 = vpow.pop %v2133
        %v2135 = vmul.f32 %v2123, 1.442695
        %v2136 = vpow.pop %v2135
        %v2137 = vmul.f32 %v2124, 1.442695
        %v2138 = vpow.pop %v2137
        %v2139 = vmul.f32 %v2125, 1.442695
        %v2140 = vpow.pop %v2139
        %v2141 = vmul.f32 %v2126, 1.442695
        %v2142 = vpow.pop %v2141
        %v2143 = vsel %vm1042, %v2128, 0.0
        %2144 = vadd.xlane.f32.xlu0 %v2143
        %v2145 = vpop.xlane.xlu0 %2144
        %v2146 = vsel %vm1042, %v2130, 0.0
        %2147 = vadd.xlane.f32.xlu0 %v2146
        %v2148 = vpop.xlane.xlu0 %2147
        %v2149 = vsel %vm1042, %v2132, 0.0
        %2150 = vadd.xlane.f32.xlu0 %v2149
        %v2151 = vpop.xlane.xlu0 %2150
        %v2152 = vsel %vm1042, %v2134, 0.0
        %2153 = vadd.xlane.f32.xlu0 %v2152
        %v2154 = vpop.xlane.xlu0 %2153
        %v2155 = vsel %vm1042, %v2136, 0.0
        %2156 = vadd.xlane.f32.xlu0 %v2155
        %v2157 = vpop.xlane.xlu0 %2156
        %v2158 = vsel %vm1042, %v2138, 0.0
        %2159 = vadd.xlane.f32.xlu0 %v2158
        %v2160 = vpop.xlane.xlu0 %2159
        %v2161 = vsel %vm1042, %v2140, 0.0
        %2162 = vadd.xlane.f32.xlu0 %v2161
        %v2163 = vpop.xlane.xlu0 %2162
        %v2164 = vsel %vm1042, %v2142, 0.0
        %2165 = vadd.xlane.f32.xlu0 %v2164
        %v2166 = vpop.xlane.xlu0 %2165
        %s2167 = sld [smem:[#allocation9 + $0xa]]
        %v2168 = vmax.f32 %v2145, 1e-10
        %v2169 = vmax.f32 %v2148, 1e-10
        %v2170 = vmax.f32 %v2151, 1e-10
        %v2171 = vmax.f32 %v2154, 1e-10
        %v2172 = vmax.f32 %v2157, 1e-10
        %v2173 = vmax.f32 %v2160, 1e-10
        %v2174 = vmax.f32 %v2163, 1e-10
        %v2175 = vmax.f32 %v2166, 1e-10
        %v2176 = vlog2.pop %v2168
        %v2177 = vmul.f32 %v2176, 0.6931472
        %v2178 = vlog2.pop %v2169
        %v2179 = vmul.f32 %v2178, 0.6931472
        %v2180 = vlog2.pop %v2170
        %v2181 = vmul.f32 %v2180, 0.6931472
        %v2182 = vlog2.pop %v2171
        %v2183 = vmul.f32 %v2182, 0.6931472
        %v2184 = vlog2.pop %v2172
        %v2185 = vmul.f32 %v2184, 0.6931472
        %v2186 = vlog2.pop %v2173
        %v2187 = vmul.f32 %v2186, 0.6931472
        %v2188 = vlog2.pop %v2174
        %v2189 = vmul.f32 %v2188, 0.6931472
        %v2190 = vlog2.pop %v2175
        %v2191 = vmul.f32 %v2190, 0.6931472
        %v2192 = vstv %s2167
        %v2193 = vmul.f32 %v2192, %v2177
        %v2194 = vmul.f32 %v2192, %v2179
        %v2195 = vmul.f32 %v2192, %v2181
        %v2196 = vmul.f32 %v2192, %v2183
        %v2197 = vmul.f32 %v2192, %v2185
        %v2198 = vmul.f32 %v2192, %v2187
        %v2199 = vmul.f32 %v2192, %v2189
        %v2200 = vmul.f32 %v2192, %v2191
        %v2201 = vadd.f32 %v2091, %v2193
        %v2202 = vadd.f32 %v2092, %v2194
        %v2203 = vadd.f32 %v2093, %v2195
        %v2204 = vadd.f32 %v2094, %v2196
        %v2205 = vadd.f32 %v2095, %v2197
        %v2206 = vadd.f32 %v2096, %v2198
        %v2207 = vadd.f32 %v2097, %v2199
        %v2208 = vadd.f32 %v2098, %v2200
        %v2210 = vlaneseq
        %v2211 = vshrl.u32 %v2210, 7
        %v2212 = vsub.s32 0, %v2211
        %v2213 = vrot.slane %v465, %v2212
        %2215 = vbcast.lane.b32.xlu0 %v2213, 256
        %v2216 = vpop.permute.xlu0 %2215
        %v2217 = vlaneseq
        %v2218 = vshrl.u32 %v2217, 7
        %v2219 = vsub.s32 1, %v2218
        %v2220 = vrot.slane %v465, %v2219
        %2222 = vbcast.lane.b32.xlu0 %v2220, 256
        %v2223 = vpop.permute.xlu0 %2222
        %v2224 = vlaneseq
        %v2225 = vshrl.u32 %v2224, 7
        %v2226 = vsub.s32 2, %v2225
        %v2227 = vrot.slane %v465, %v2226
        %2229 = vbcast.lane.b32.xlu0 %v2227, 256
        %v2230 = vpop.permute.xlu0 %2229
        %v2231 = vlaneseq
        %v2232 = vshrl.u32 %v2231, 7
        %v2233 = vsub.s32 3, %v2232
        %v2234 = vrot.slane %v465, %v2233
        %2236 = vbcast.lane.b32.xlu0 %v2234, 256
        %v2237 = vpop.permute.xlu0 %2236
        %v2238 = vlaneseq
        %v2239 = vshrl.u32 %v2238, 7
        %v2240 = vsub.s32 4, %v2239
        %v2241 = vrot.slane %v465, %v2240
        %2243 = vbcast.lane.b32.xlu0 %v2241, 256
        %v2244 = vpop.permute.xlu0 %2243
        %v2245 = vlaneseq
        %v2246 = vshrl.u32 %v2245, 7
        %v2247 = vsub.s32 5, %v2246
        %v2248 = vrot.slane %v465, %v2247
        %2250 = vbcast.lane.b32.xlu0 %v2248, 256
        %v2251 = vpop.permute.xlu0 %2250
        %v2252 = vlaneseq
        %v2253 = vshrl.u32 %v2252, 7
        %v2254 = vsub.s32 6, %v2253
        %v2255 = vrot.slane %v465, %v2254
        %2257 = vbcast.lane.b32.xlu0 %v2255, 256
        %v2258 = vpop.permute.xlu0 %2257
        %v2259 = vlaneseq
        %v2260 = vshrl.u32 %v2259, 7
        %v2261 = vsub.s32 7, %v2260
        %v2262 = vrot.slane %v465, %v2261
        %2264 = vbcast.lane.b32.xlu0 %v2262, 256
        %v2265 = vpop.permute.xlu0 %2264
        %v2274 = vmul.f32 %v2201, %v2216
        %v2275 = vmul.f32 %v2202, %v2223
        %v2276 = vmul.f32 %v2203, %v2230
        %v2277 = vmul.f32 %v2204, %v2237
        %v2278 = vmul.f32 %v2205, %v2244
        %v2279 = vmul.f32 %v2206, %v2251
        %v2280 = vmul.f32 %v2207, %v2258
        %v2281 = vmul.f32 %v2208, %v2265
        %2290 = vset.pattern.permute.xlu0 0
        %2291 = vperm.xlu0 %2290, %v2274
        %v2292 = vpop.permute.xlu0 %2291
        %2293 = vset.pattern.permute.xlu0 0
        %2294 = vperm.xlu0 %2293, %v2275
        %v2295 = vpop.permute.xlu0 %2294
        %2296 = vset.pattern.permute.xlu0 0
        %2297 = vperm.xlu0 %2296, %v2276
        %v2298 = vpop.permute.xlu0 %2297
        %2299 = vset.pattern.permute.xlu0 0
        %2300 = vperm.xlu0 %2299, %v2277
        %v2301 = vpop.permute.xlu0 %2300
        %2302 = vset.pattern.permute.xlu0 0
        %2303 = vperm.xlu0 %2302, %v2278
        %v2304 = vpop.permute.xlu0 %2303
        %2305 = vset.pattern.permute.xlu0 0
        %2306 = vperm.xlu0 %2305, %v2279
        %v2307 = vpop.permute.xlu0 %2306
        %2308 = vset.pattern.permute.xlu0 0
        %2309 = vperm.xlu0 %2308, %v2280
        %v2310 = vpop.permute.xlu0 %2309
        %2311 = vset.pattern.permute.xlu0 0
        %2312 = vperm.xlu0 %2311, %v2281
        %v2313 = vpop.permute.xlu0 %2312
        %v2314 = vlaneseq
        %v2315 = vand.u32 %v2314, 127
        %v2316 = vlaneseq
        %v2317 = vshrl.u32 %v2316, 7
        %v2318 = vsub.s32 %v2315, %v2317
        %v2319 = vrot.slane %v2292, %v2318
        %v2320 = vlaneseq
        %v2321 = vshrl.u32 %v2320, 7
        %v2322 = vsub.s32 %v2315, %v2321
        %v2323 = vrot.slane %v2295, %v2322
        %v2324 = vlaneseq
        %v2325 = vshrl.u32 %v2324, 7
        %v2326 = vsub.s32 %v2315, %v2325
        %v2327 = vrot.slane %v2298, %v2326
        %v2328 = vlaneseq
        %v2329 = vshrl.u32 %v2328, 7
        %v2330 = vsub.s32 %v2315, %v2329
        %v2331 = vrot.slane %v2301, %v2330
        %v2332 = vlaneseq
        %v2333 = vshrl.u32 %v2332, 7
        %v2334 = vsub.s32 %v2315, %v2333
        %v2335 = vrot.slane %v2304, %v2334
        %v2336 = vlaneseq
        %v2337 = vshrl.u32 %v2336, 7
        %v2338 = vsub.s32 %v2315, %v2337
        %v2339 = vrot.slane %v2307, %v2338
        %v2340 = vlaneseq
        %v2341 = vshrl.u32 %v2340, 7
        %v2342 = vsub.s32 %v2315, %v2341
        %v2343 = vrot.slane %v2310, %v2342
        %v2344 = vlaneseq
        %v2345 = vshrl.u32 %v2344, 7
        %v2346 = vsub.s32 %v2315, %v2345
        %v2347 = vrot.slane %v2313, %v2346
        %vm2348 = vcmask 1041409
        %v2349 = vsel %vm2348, %v2323, %v2319
        %vm2350 = vcmask 1042434
        %v2351 = vsel %vm2350, %v2327, %v2349
        %vm2352 = vcmask 1043459
        %v2353 = vsel %vm2352, %v2331, %v2351
        %vm2354 = vcmask 1044484
        %v2355 = vsel %vm2354, %v2335, %v2353
        %vm2356 = vcmask 1045509
        %v2357 = vsel %vm2356, %v2339, %v2355
        %vm2358 = vcmask 1046534
        %v2359 = vsel %vm2358, %v2343, %v2357
        %vm2360 = vcmask 1047559
        %v2361 = vsel %vm2360, %v2347, %v2359
        %vm2363 = vcmask 64512
        %v2364 = vsel %vm2363, %v2361, 0.0
        %2365 = vadd.xlane.f32.xlu0 %v2364
        %v2366 = vpop.xlane.xlu0 %2365
        %s2367 = sld [smem:[#allocation2]]
        %v2368 = vstv %s2367
        %v2369 = vadd.f32 %v2366, %v2368
        %v2371 = vlaneseq
        %v2372 = vshrl.u32 %v2371, 7
        %v2373 = vsub.s32 %v2315, %v2372
        %v2374 = vrot.slane %v2369, %v2373
        %vm2376 = vcmask 57344
        %2377 = vst.msk [vmem:[%s429] sm:$0x1] %vm2376, %v2374
        %s2378 = sand.u32 %s227, 1
        %s2379 = scalar_lea.sflag [#allocation5], %s2378
        %s2380 = sand.u32 %s227, 1
        %s2381 = scalar_lea.vmem [#allocation13], %s2380
        // Predicated region
        $region73: #{tpu_custom_call.1} parent=51 // pred_check
          %p2382 = pneg %p237
        $region74: #{tpu_custom_call.1} parent=51 // pred_check_branch
          %2384 = sbr.rel (%p2382) target = $region76
        $region75: #{tpu_custom_call.1} parent=51 // pred_region
          %s2386 = ssub.s32 16, 16
          %2387 = vsyncadd %s2379, %s2386
          %s2388 = smul.addr %s31, 16
          %s2389 = scalar_lea.hbm %s8, %s2388
          %s2391 = sshll.u32 %s2381, 4
          %s2392 = int_to_ptr.vmem [resolvable:$true] %s2391
          %2394 = dma.vmem_to_hbm [thread:$0]  %s2392, 16, %s2389, %s2379
        $region76: #{tpu_custom_call.1} parent=51 // pred_fallthru
          _
      $region52: #{tpu_custom_call.1} parent=5 // pred_fallthru
        _
      %p2395 = scmp.le.s32.totalorder 2, %s26
      // Predicated region
      $region77: #{tpu_custom_call.1} parent=5 // pred_check
        %p2396 = pneg %p2395
      $region78: #{tpu_custom_call.1} parent=5 // pred_check_branch
        %2398 = sbr.rel (%p2396) target = $region80
      $region79: #{tpu_custom_call.1} parent=5 // pred_region
        %s2399 = ssub.s32 %s26, 2
        // Predicated region
        $region81: #{tpu_custom_call.1} parent=79 // pred_check
          %p2400 = pneg %p243
        $region82: #{tpu_custom_call.1} parent=79 // pred_check_branch
          %2402 = sbr.rel (%p2400) target = $region84
        $region83: #{tpu_custom_call.1} parent=79 // pred_region
          %s2403 = sand.u32 %s228, 1
          %s2404 = scalar_lea.sflag [#allocation5], %s2403
          %s2405 = sand.u32 %s228, 1
          %s2406 = scalar_lea.vmem [#allocation13], %s2405
          %2407 = dma.done %s2404, 16
        $region84: #{tpu_custom_call.1} parent=79 // pred_fallthru
          _
      $region80: #{tpu_custom_call.1} parent=5 // pred_fallthru
        _
    $region6: #{tpu_custom_call.1} parent=1 // loop_footer
      %s30 = sadd.s32 1, %s26
    $region7: #{tpu_custom_call.1} parent=1 // loop_footer_branch
      %25 = sbr.rel target = $region3
    $region8: #{tpu_custom_call.1} parent=1 // loop_exit
      _
    %2408 = vsyncpa [#allocation4], 1
    %s2409 = scalar_lea.sflag [#allocation4], 1
    %2410 = vsyncpa %s2409, 1
    %2411 = vsyncpa [#allocation12], 1
    %s2412 = scalar_lea.sflag [#allocation12], 1
    %2413 = vsyncpa %s2412, 1
    %2414 = vsyncpa [#allocation5], 1
    %s2415 = scalar_lea.sflag [#allocation5], 1
    %2416 = vsyncpa %s2415, 1
    %2417 = vsyncpa [#allocation6], 1
    %s2418 = scalar_lea.sflag [#allocation6], 1
    %2419 = vsyncpa %s2418, 1
    %2420 = vsyncpa [#allocation8], 1

</llo_original>
